<compile_context>
chip_gen: v5e
topology: v5e:2x2
jax: 0.10.0
libtpu: 0.0.40
codegen_flags: <defaults>
</compile_context>

<pallas_src>
import jax
import jax.numpy as jnp
from jax import lax
from jax.experimental import pallas as pl
from jax.experimental.pallas import tpu as pltpu

# Hyperparameters consistent with the PyTorch module's __init__.
VOCAB = 16        # vocab_size V
ENC = 32          # input_encoding_size W
IMG_DIM = 64      # image_vector_dim D
HID = 32          # rnn_size H (== ENC so the stacked LSTM weights line up)
SEQ_LEN = 8       # seq_length T
NUM_LAYERS = 2
BATCH = 2
V3 = VOCAB + 3
V3P = 128         # head output padded to a full lane width (unmasked stores)
EMB_ROWS = 32     # embedding table rows padded 19 -> 32 (one-hot width)
START_TOKEN = VOCAB + 1
TP1 = SEQ_LEN + 1          # output timesteps (timestep 0 is dropped)
TT = SEQ_LEN + 2           # total LSTM timesteps (image vec + START + T tokens)
MAX_NB = 256               # max batch rows per grid block

assert ENC == HID, "LSTM weight stacking assumes input_encoding_size == rnn_size"
assert 4 * HID == 128      # gates occupy exactly one f32 vreg lane-wise
assert NUM_LAYERS == 2     # kernel wavefront-fuses exactly two LSTM layers
assert V3 <= EMB_ROWS and START_TOKEN < EMB_ROWS


def _lm_kernel(img_ref, tok_ref, enc_w_ref, enc_b_ref, emb_ref,
               wih0_ref, whh0_ref, b0_ref, w1_ref, b1_ref,
               wout_ref, bout_ref, out_ref, gx_sc, hout_sc):
    nb = img_ref.shape[0]
    f32 = jnp.float32
    bf16 = jnp.bfloat16
    b0 = b0_ref[...]                                             # (1, 4H)

    # ---- hoisted layer-0 input projections (independent of the recurrence) --
    # LSTM step 0: image encoder Linear(D->W) + ReLU (one-shot, kept f32).
    wv = jnp.maximum(
        jnp.dot(img_ref[...], enc_w_ref[...], preferred_element_type=f32)
        + enc_b_ref[...], 0.0)                                   # (nb, W)
    gx_sc[0] = jnp.dot(wv.astype(bf16), wih0_ref[...],
                       preferred_element_type=f32) + b0

    # token -> layer-0 gates table (embedding row @ W_ih0 + b), VMEM-resident.
    table = jnp.dot(emb_ref[...], wih0_ref[...],
                    preferred_element_type=f32) + b0             # (EMB_ROWS, 4H)
    # LSTM step 1: START token -> same gates row broadcast over the batch.
    gx_sc[1] = jnp.broadcast_to(table[START_TOKEN:START_TOKEN + 1, :],
                                (nb, 4 * HID))
    # LSTM steps 2..TT-1: in-kernel "embedding gather" via one-hot @ table.
    table_bf = table.astype(bf16)
    tok = tok_ref[...]                                           # (nb, T) int32
    lane_ids = lax.broadcasted_iota(jnp.int32, (nb, EMB_ROWS), 1)
    for t in range(SEQ_LEN):
        onehot = jnp.where(tok[:, t:t + 1] == lane_ids, 1.0, 0.0).astype(bf16)
        gx_sc[2 + t] = jnp.dot(onehot, table_bf, preferred_element_type=f32)

    whh0 = whh0_ref[...]                                         # (H, 4H) bf16
    w1 = w1_ref[...]                                             # (2H, 4H) bf16
    b1 = b1_ref[...]                                             # (1, 4H) f32

    def lstm_gates(gates, c):
        # sigmoid(x) = 0.5*tanh(0.5*x)+0.5: one EUP push instead of exp+divide.
        # One sigmoid + one tanh over the full (nb, 4H) vreg, sliced after
        # (PyTorch gate order i, f, g, o).  Gate/cell math stays f32.
        sig = 0.5 * jnp.tanh(0.5 * gates) + 0.5
        th = jnp.tanh(gates)
        i_g = sig[:, 0:HID]
        f_g = sig[:, HID:2 * HID]
        g_g = th[:, 2 * HID:3 * HID]
        o_g = sig[:, 3 * HID:4 * HID]
        c_new = f_g * c + i_g * g_g
        h_new = o_g * jnp.tanh(c_new)
        return h_new.astype(bf16), c_new

    def layer1_step(h0_in, h1_in, c1_in):
        # stacked [h0 ; h1] @ [W_ih1 ; W_hh1]: single MXU push for layer 1.
        x1 = jnp.concatenate([h0_in, h1_in], axis=1)             # (nb, 2H) bf16
        g1 = jnp.dot(x1, w1, preferred_element_type=f32) + b1
        return lstm_gates(g1, c1_in)

    h0 = jnp.zeros((nb, HID), bf16)
    c0 = jnp.zeros((nb, HID), f32)
    h1 = jnp.zeros((nb, HID), bf16)
    c1 = jnp.zeros((nb, HID), f32)

    # Wavefront over the two layers: layer-0 step t and layer-1 step t-1 are
    # independent inside one unrolled iteration -> their chains overlap.
    for t in range(TT):
        g0 = gx_sc[t] + jnp.dot(h0, whh0, preferred_element_type=f32)
        h0_new, c0 = lstm_gates(g0, c0)
        if t >= 1:
            h1, c1 = layer1_step(h0, h1, c1)     # consumes h0_{t-1}
            if t >= 2:                           # layer-1 output of step t-1
                hout_sc[t - 2] = h1.astype(f32)  # (step-0 output is dropped)
        h0 = h0_new
    h1, c1 = layer1_step(h0, h1, c1)             # final layer-1 step TT-1
    hout_sc[TP1 - 1] = h1.astype(f32)

    # ---- output head: one fused Linear(H -> 128-padded) matmul ----
    hcat = hout_sc[...].reshape(TP1 * nb, HID).astype(bf16)
    logits = (jnp.dot(hcat, wout_ref[...], preferred_element_type=f32)
              + bout_ref[...])                                   # (TP1*nb, 128)
    # Batch-major, lane-dense stores: removes the wrapper-side padded
    # output transpose entirely.
    for t in range(TP1):
        out_ref[:, t, :] = logits[t * nb:(t + 1) * nb, :]


def _pick_batch_block(n):
    """Batch rows per grid block (multiple of 8, <= MAX_NB); >=2 blocks when
    the batch allows so v7x's second TensorCore gets work."""
    n8 = ((n + 7) // 8) * 8
    nb = min(MAX_NB, n8)
    if n8 >= 16:
        nb = min(nb, ((n8 // 2 + 7) // 8) * 8)
    n_pad = ((n + nb - 1) // nb) * nb
    return nb, n_pad


@jax.jit
def language_model_forward(image_vectors, gt_sequence, params):
    n = gt_sequence.shape[0]
    nb, n_pad = _pick_batch_block(n)
    pad = n_pad - n
    num_blocks = n_pad // nb
    bf16 = jnp.bfloat16

    # batch-blocked inputs (padded rows run on garbage and are discarded)
    img_p = jnp.pad(image_vectors.astype(jnp.float32), ((0, pad), (0, 0)))
    tok_p = jnp.pad(gt_sequence.astype(jnp.int32), ((0, pad), (0, 0)))

    # pre-transpose weights to (in_features, out_features); recurrence / head
    # weights in bf16 (f32 accumulation inside the kernel), biases f32.
    enc_w_t = params['enc_w'].T.astype(jnp.float32)                  # (D, W)
    enc_b = params['enc_b'][None, :].astype(jnp.float32)             # (1, W)
    emb_pad = jnp.pad(params['emb_table'],
                      ((0, EMB_ROWS - V3), (0, 0))).astype(bf16)     # (32, W)
    wih0_t = params['w_ih'][0].T.astype(bf16)                        # (H, 4H)
    whh0_t = params['w_hh'][0].T.astype(bf16)                        # (H, 4H)
    b0 = (params['b_ih'][0] + params['b_hh'][0])[None, :].astype(jnp.float32)
    w1_t = jnp.concatenate([params['w_ih'][1].T, params['w_hh'][1].T],
                           axis=0).astype(bf16)                      # (2H, 4H)
    b1 = (params['b_ih'][1] + params['b_hh'][1])[None, :].astype(jnp.float32)
    wout_t = jnp.pad(params['w_out'].T,
                     ((0, 0), (0, V3P - V3))).astype(bf16)           # (H, 128)
    bout = jnp.pad(params['b_out'][None, :],
                   ((0, 0), (0, V3P - V3))).astype(jnp.float32)      # (1, 128)

    out_bm = pl.pallas_call(
        _lm_kernel,
        out_shape=jax.ShapeDtypeStruct((n_pad, TP1, V3P), jnp.float32),
        grid=(num_blocks,),
        in_specs=[
            pl.BlockSpec((nb, IMG_DIM), lambda i: (i, 0)),
            pl.BlockSpec((nb, SEQ_LEN), lambda i: (i, 0)),
            pl.BlockSpec((IMG_DIM, ENC), lambda i: (0, 0)),
            pl.BlockSpec((1, ENC), lambda i: (0, 0)),
            pl.BlockSpec((EMB_ROWS, ENC), lambda i: (0, 0)),
            pl.BlockSpec((ENC, 4 * HID), lambda i: (0, 0)),
            pl.BlockSpec((HID, 4 * HID), lambda i: (0, 0)),
            pl.BlockSpec((1, 4 * HID), lambda i: (0, 0)),
            pl.BlockSpec((2 * HID, 4 * HID), lambda i: (0, 0)),
            pl.BlockSpec((1, 4 * HID), lambda i: (0, 0)),
            pl.BlockSpec((HID, V3P), lambda i: (0, 0)),
            pl.BlockSpec((1, V3P), lambda i: (0, 0)),
        ],
        out_specs=pl.BlockSpec((nb, TP1, V3P), lambda i: (i, 0, 0)),
        scratch_shapes=[pltpu.VMEM((TT, nb, 4 * HID), jnp.float32),   # layer-0 gx
                        pltpu.VMEM((TP1, nb, HID), jnp.float32)],     # layer-1 h
        compiler_params=pltpu.CompilerParams(
            dimension_semantics=("parallel",)),
    )(img_p, tok_p, enc_w_t, enc_b, emb_pad, wih0_t, whh0_t, b0,
      w1_t, b1, wout_t, bout)

    # already batch-major; just drop batch padding and padded head lanes
    return out_bm[:n, :, :V3]


def reference_forward(image_vectors, gt_sequence, params):
    """Pure-JAX f32 reference matching the PyTorch forward (training path)."""
    n = image_vectors.shape[0]
    wv = jax.nn.relu(image_vectors @ params['enc_w'].T + params['enc_b'])
    gt_with_start = jnp.concatenate(
        [jnp.full((n, 1), START_TOKEN, dtype=gt_sequence.dtype), gt_sequence],
        axis=1)
    emb = params['emb_table'][gt_with_start]                 # (N, T+1, W)
    seq = jnp.concatenate([wv[:, None, :], emb], axis=1)     # (N, T+2, W)
    for l in range(NUM_LAYERS):
        h = jnp.zeros((n, HID), jnp.float32)
        c = jnp.zeros((n, HID), jnp.float32)
        outs = []
        for t in range(TT):
            gates = (seq[:, t, :] @ params['w_ih'][l].T
                     + h @ params['w_hh'][l].T
                     + params['b_ih'][l] + params['b_hh'][l])
            i_g = jax.nn.sigmoid(gates[:, 0:HID])
            f_g = jax.nn.sigmoid(gates[:, HID:2 * HID])
            g_g = jnp.tanh(gates[:, 2 * HID:3 * HID])
            o_g = jax.nn.sigmoid(gates[:, 3 * HID:4 * HID])
            c = f_g * c + i_g * g_g
            h = o_g * jnp.tanh(c)
            outs.append(h)
        seq = jnp.stack(outs, axis=1)
    logits = seq @ params['w_out'].T + params['b_out']
    return logits[:, 1:, :]


if __name__ == "__main__":
    key = jax.random.PRNGKey(0)
    ks = jax.random.split(key, 11)
    s = 0.1
    params = dict(
        enc_w=jax.random.normal(ks[0], (ENC, IMG_DIM), jnp.float32) * s,
        enc_b=jax.random.normal(ks[1], (ENC,), jnp.float32) * s,
        emb_table=jax.random.normal(ks[2], (VOCAB + 3, ENC), jnp.float32) * s,
        w_ih=jax.random.normal(ks[3], (NUM_LAYERS, 4 * HID, HID), jnp.float32) * s,
        w_hh=jax.random.normal(ks[4], (NUM_LAYERS, 4 * HID, HID), jnp.float32) * s,
        b_ih=jax.random.normal(ks[5], (NUM_LAYERS, 4 * HID), jnp.float32) * s,
        b_hh=jax.random.normal(ks[6], (NUM_LAYERS, 4 * HID), jnp.float32) * s,
        w_out=jax.random.normal(ks[7], (V3, HID), jnp.float32) * s,
        b_out=jax.random.normal(ks[8], (V3,), jnp.float32) * s,
    )
    image_vectors = jax.random.normal(ks[9], (BATCH, IMG_DIM), jnp.float32)
    gt_sequence = jax.random.randint(ks[10], (BATCH, SEQ_LEN), 1, VOCAB + 1)

    out = language_model_forward(image_vectors, gt_sequence, params)
    out = jax.block_until_ready(out)
    ref = reference_forward(image_vectors, gt_sequence, params)

    assert out.shape == (BATCH, SEQ_LEN + 1, V3), out.shape
    # kernel uses bf16 matmul operands (f32 accumulation) -> slightly looser
    # tolerance than a pure-f32 comparison.
    assert float(jnp.max(jnp.abs(out - ref))) < 5e-3
    print("KERNEL_OK")
</pallas_src>

<mosaic_0001>
module attributes {stable_mosaic.version = 11 : i64} {
  func.func @_lm_kernel(%arg0: i32, %arg1: memref<8x64xf32, #tpu.memory_space<vmem>>, %arg2: memref<8x8xi32, #tpu.memory_space<vmem>>, %arg3: memref<64x32xf32, #tpu.memory_space<vmem>>, %arg4: memref<1x32xf32, #tpu.memory_space<vmem>>, %arg5: memref<32x32xbf16, #tpu.memory_space<vmem>>, %arg6: memref<32x128xbf16, #tpu.memory_space<vmem>>, %arg7: memref<32x128xbf16, #tpu.memory_space<vmem>>, %arg8: memref<1x128xf32, #tpu.memory_space<vmem>>, %arg9: memref<64x128xbf16, #tpu.memory_space<vmem>>, %arg10: memref<1x128xf32, #tpu.memory_space<vmem>>, %arg11: memref<32x128xbf16, #tpu.memory_space<vmem>>, %arg12: memref<1x128xf32, #tpu.memory_space<vmem>>, %arg13: memref<8x9x128xf32, #tpu.memory_space<vmem>>, %arg14: memref<10x8x128xf32, #tpu.memory_space<vmem>>, %arg15: memref<9x8x32xf32, #tpu.memory_space<vmem>>) attributes {dimension_semantics = [#tpu.dimension_semantics<parallel>], iteration_bounds = array<i64: 1>, scalar_prefetch = 0 : i64, scratch_operands = 2 : i64, tpu.core_type = #tpu.core_type<tc>, window_params = [{transform_indices = @transform_0, window_bounds = array<i64: 8, 64>}, {transform_indices = @transform_1, window_bounds = array<i64: 8, 8>}, {pipeline_mode = #tpu.pipeline_mode<synchronous>, transform_indices = @transform_2, window_bounds = array<i64: 64, 32>}, {pipeline_mode = #tpu.pipeline_mode<synchronous>, transform_indices = @transform_3, window_bounds = array<i64: 1, 32>}, {pipeline_mode = #tpu.pipeline_mode<synchronous>, transform_indices = @transform_4, window_bounds = array<i64: 32, 32>}, {pipeline_mode = #tpu.pipeline_mode<synchronous>, transform_indices = @transform_5, window_bounds = array<i64: 32, 128>}, {pipeline_mode = #tpu.pipeline_mode<synchronous>, transform_indices = @transform_6, window_bounds = array<i64: 32, 128>}, {pipeline_mode = #tpu.pipeline_mode<synchronous>, transform_indices = @transform_7, window_bounds = array<i64: 1, 128>}, {pipeline_mode = #tpu.pipeline_mode<synchronous>, transform_indices = @transform_8, window_bounds = array<i64: 64, 128>}, {pipeline_mode = #tpu.pipeline_mode<synchronous>, transform_indices = @transform_9, window_bounds = array<i64: 1, 128>}, {pipeline_mode = #tpu.pipeline_mode<synchronous>, transform_indices = @transform_10, window_bounds = array<i64: 32, 128>}, {pipeline_mode = #tpu.pipeline_mode<synchronous>, transform_indices = @transform_11, window_bounds = array<i64: 1, 128>}, {transform_indices = @transform_12, window_bounds = array<i64: 8, 9, 128>}]} {
    %c0 = arith.constant 0 : index
    %c0_0 = arith.constant 0 : index
    %0 = vector.load %arg8[%c0, %c0_0] : memref<1x128xf32, #tpu.memory_space<vmem>>, vector<1x128xf32>
    %c0_1 = arith.constant 0 : index
    %c0_2 = arith.constant 0 : index
    %1 = vector.load %arg1[%c0_1, %c0_2] : memref<8x64xf32, #tpu.memory_space<vmem>>, vector<8x64xf32>
    %c0_3 = arith.constant 0 : index
    %c0_4 = arith.constant 0 : index
    %2 = vector.load %arg3[%c0_3, %c0_4] : memref<64x32xf32, #tpu.memory_space<vmem>>, vector<64x32xf32>
    %cst = arith.constant dense<0.000000e+00> : vector<8x32xf32>
    %3 = tpu.matmul %1, %2, %cst {dimension_numbers = #tpu.dot_dimension_numbers<[1], [0], [0], [1], [0, 0, 1, 1], [], []>} : vector<8x64xf32>, vector<64x32xf32>, vector<8x32xf32> -> vector<8x32xf32>
    %c0_5 = arith.constant 0 : index
    %c0_6 = arith.constant 0 : index
    %4 = vector.load %arg4[%c0_5, %c0_6] : memref<1x32xf32, #tpu.memory_space<vmem>>, vector<1x32xf32>
    %5 = vector.broadcast %4 : vector<1x32xf32> to vector<8x32xf32>
    %6 = arith.addf %3, %5 : vector<8x32xf32>
    %cst_7 = arith.constant 0.000000e+00 : f32
    %7 = vector.broadcast %cst_7 : f32 to vector<8x32xf32>
    %8 = arith.maximumf %6, %7 : vector<8x32xf32>
    %9 = arith.truncf %8 : vector<8x32xf32> to vector<8x32xbf16>
    %c0_8 = arith.constant 0 : index
    %c0_9 = arith.constant 0 : index
    %10 = vector.load %arg6[%c0_8, %c0_9] : memref<32x128xbf16, #tpu.memory_space<vmem>>, vector<32x128xbf16>
    %cst_10 = arith.constant dense<0.000000e+00> : vector<8x128xf32>
    %11 = tpu.matmul %9, %10, %cst_10 {dimension_numbers = #tpu.dot_dimension_numbers<[1], [0], [0], [1], [0, 0, 1, 1], [], []>} : vector<8x32xbf16>, vector<32x128xbf16>, vector<8x128xf32> -> vector<8x128xf32>
    %12 = vector.broadcast %0 : vector<1x128xf32> to vector<8x128xf32>
    %13 = arith.addf %11, %12 : vector<8x128xf32>
    %c0_11 = arith.constant 0 : index
    %c0_12 = arith.constant 0 : index
    %c0_13 = arith.constant 0 : index
    %14 = vector.load %arg14[%c0_11, %c0_12, %c0_13] : memref<10x8x128xf32, #tpu.memory_space<vmem>>, vector<1x8x128xf32>
    %15 = vector.shape_cast %14 : vector<1x8x128xf32> to vector<8x128xf32>
    %16 = vector.shape_cast %13 : vector<8x128xf32> to vector<1x8x128xf32>
    tpu.vector_store %arg14[%c0_11, %c0_12, %c0_13], %16 {strides = array<i32>} : memref<10x8x128xf32, #tpu.memory_space<vmem>>, vector<1x8x128xf32>,
    %c0_14 = arith.constant 0 : index
    %c0_15 = arith.constant 0 : index
    %17 = vector.load %arg5[%c0_14, %c0_15] : memref<32x32xbf16, #tpu.memory_space<vmem>>, vector<32x32xbf16>
    %c0_16 = arith.constant 0 : index
    %c0_17 = arith.constant 0 : index
    %18 = vector.load %arg6[%c0_16, %c0_17] : memref<32x128xbf16, #tpu.memory_space<vmem>>, vector<32x128xbf16>
    %cst_18 = arith.constant dense<0.000000e+00> : vector<32x128xf32>
    %19 = tpu.matmul %17, %18, %cst_18 {dimension_numbers = #tpu.dot_dimension_numbers<[1], [0], [0], [1], [0, 0, 1, 1], [], []>} : vector<32x32xbf16>, vector<32x128xbf16>, vector<32x128xf32> -> vector<32x128xf32>
    %20 = vector.broadcast %0 : vector<1x128xf32> to vector<32x128xf32>
    %21 = arith.addf %19, %20 : vector<32x128xf32>
    %22 = vector.extract_strided_slice %21 {offsets = [17, 0], sizes = [1, 128], strides = [1, 1]} : vector<32x128xf32> to vector<1x128xf32>
    %23 = vector.shape_cast %22 : vector<1x128xf32> to vector<1x128xf32>
    %24 = vector.broadcast %23 : vector<1x128xf32> to vector<8x128xf32>
    %c1 = arith.constant 1 : index
    %c0_19 = arith.constant 0 : index
    %c0_20 = arith.constant 0 : index
    %25 = vector.load %arg14[%c1, %c0_19, %c0_20] : memref<10x8x128xf32, #tpu.memory_space<vmem>>, vector<1x8x128xf32>
    %26 = vector.shape_cast %25 : vector<1x8x128xf32> to vector<8x128xf32>
    %27 = vector.shape_cast %24 : vector<8x128xf32> to vector<1x8x128xf32>
    tpu.vector_store %arg14[%c1, %c0_19, %c0_20], %27 {strides = array<i32>} : memref<10x8x128xf32, #tpu.memory_space<vmem>>, vector<1x8x128xf32>,
    %28 = arith.truncf %21 : vector<32x128xf32> to vector<32x128xbf16>
    %c0_21 = arith.constant 0 : index
    %c0_22 = arith.constant 0 : index
    %29 = vector.load %arg2[%c0_21, %c0_22] : memref<8x8xi32, #tpu.memory_space<vmem>>, vector<8x8xi32>
    %30 = tpu.iota {dimensions = array<i32: 1>} : vector<8x32xi32>
    %31 = vector.extract_strided_slice %29 {offsets = [0, 0], sizes = [8, 1], strides = [1, 1]} : vector<8x8xi32> to vector<8x1xi32>
    %32 = vector.broadcast %31 : vector<8x1xi32> to vector<8x32xi32>
    %33 = arith.cmpi eq, %32, %30 : vector<8x32xi32>
    %cst_23 = arith.constant 1.000000e+00 : f32
    %cst_24 = arith.constant 0.000000e+00 : f32
    %34 = vector.broadcast %cst_23 : f32 to vector<8x32xf32>
    %35 = vector.broadcast %cst_24 : f32 to vector<8x32xf32>
    %36 = arith.select %33, %34, %35 : vector<8x32xi1>, vector<8x32xf32>
    %37 = arith.truncf %36 : vector<8x32xf32> to vector<8x32xbf16>
    %cst_25 = arith.constant dense<0.000000e+00> : vector<8x128xf32>
    %38 = tpu.matmul %37, %28, %cst_25 {dimension_numbers = #tpu.dot_dimension_numbers<[1], [0], [0], [1], [0, 0, 1, 1], [], []>} : vector<8x32xbf16>, vector<32x128xbf16>, vector<8x128xf32> -> vector<8x128xf32>
    %c2 = arith.constant 2 : index
    %c0_26 = arith.constant 0 : index
    %c0_27 = arith.constant 0 : index
    %39 = vector.load %arg14[%c2, %c0_26, %c0_27] : memref<10x8x128xf32, #tpu.memory_space<vmem>>, vector<1x8x128xf32>
    %40 = vector.shape_cast %39 : vector<1x8x128xf32> to vector<8x128xf32>
    %41 = vector.shape_cast %38 : vector<8x128xf32> to vector<1x8x128xf32>
    tpu.vector_store %arg14[%c2, %c0_26, %c0_27], %41 {strides = array<i32>} : memref<10x8x128xf32, #tpu.memory_space<vmem>>, vector<1x8x128xf32>,
    %42 = vector.extract_strided_slice %29 {offsets = [0, 1], sizes = [8, 1], strides = [1, 1]} : vector<8x8xi32> to vector<8x1xi32>
    %43 = vector.broadcast %42 : vector<8x1xi32> to vector<8x32xi32>
    %44 = arith.cmpi eq, %43, %30 : vector<8x32xi32>
    %cst_28 = arith.constant 1.000000e+00 : f32
    %cst_29 = arith.constant 0.000000e+00 : f32
    %45 = vector.broadcast %cst_28 : f32 to vector<8x32xf32>
    %46 = vector.broadcast %cst_29 : f32 to vector<8x32xf32>
    %47 = arith.select %44, %45, %46 : vector<8x32xi1>, vector<8x32xf32>
    %48 = arith.truncf %47 : vector<8x32xf32> to vector<8x32xbf16>
    %cst_30 = arith.constant dense<0.000000e+00> : vector<8x128xf32>
    %49 = tpu.matmul %48, %28, %cst_30 {dimension_numbers = #tpu.dot_dimension_numbers<[1], [0], [0], [1], [0, 0, 1, 1], [], []>} : vector<8x32xbf16>, vector<32x128xbf16>, vector<8x128xf32> -> vector<8x128xf32>
    %c3 = arith.constant 3 : index
    %c0_31 = arith.constant 0 : index
    %c0_32 = arith.constant 0 : index
    %50 = vector.load %arg14[%c3, %c0_31, %c0_32] : memref<10x8x128xf32, #tpu.memory_space<vmem>>, vector<1x8x128xf32>
    %51 = vector.shape_cast %50 : vector<1x8x128xf32> to vector<8x128xf32>
    %52 = vector.shape_cast %49 : vector<8x128xf32> to vector<1x8x128xf32>
    tpu.vector_store %arg14[%c3, %c0_31, %c0_32], %52 {strides = array<i32>} : memref<10x8x128xf32, #tpu.memory_space<vmem>>, vector<1x8x128xf32>,
    %53 = vector.extract_strided_slice %29 {offsets = [0, 2], sizes = [8, 1], strides = [1, 1]} : vector<8x8xi32> to vector<8x1xi32>
    %54 = vector.broadcast %53 : vector<8x1xi32> to vector<8x32xi32>
    %55 = arith.cmpi eq, %54, %30 : vector<8x32xi32>
    %cst_33 = arith.constant 1.000000e+00 : f32
    %cst_34 = arith.constant 0.000000e+00 : f32
    %56 = vector.broadcast %cst_33 : f32 to vector<8x32xf32>
    %57 = vector.broadcast %cst_34 : f32 to vector<8x32xf32>
    %58 = arith.select %55, %56, %57 : vector<8x32xi1>, vector<8x32xf32>
    %59 = arith.truncf %58 : vector<8x32xf32> to vector<8x32xbf16>
    %cst_35 = arith.constant dense<0.000000e+00> : vector<8x128xf32>
    %60 = tpu.matmul %59, %28, %cst_35 {dimension_numbers = #tpu.dot_dimension_numbers<[1], [0], [0], [1], [0, 0, 1, 1], [], []>} : vector<8x32xbf16>, vector<32x128xbf16>, vector<8x128xf32> -> vector<8x128xf32>
    %c4 = arith.constant 4 : index
    %c0_36 = arith.constant 0 : index
    %c0_37 = arith.constant 0 : index
    %61 = vector.load %arg14[%c4, %c0_36, %c0_37] : memref<10x8x128xf32, #tpu.memory_space<vmem>>, vector<1x8x128xf32>
    %62 = vector.shape_cast %61 : vector<1x8x128xf32> to vector<8x128xf32>
    %63 = vector.shape_cast %60 : vector<8x128xf32> to vector<1x8x128xf32>
    tpu.vector_store %arg14[%c4, %c0_36, %c0_37], %63 {strides = array<i32>} : memref<10x8x128xf32, #tpu.memory_space<vmem>>, vector<1x8x128xf32>,
    %64 = vector.extract_strided_slice %29 {offsets = [0, 3], sizes = [8, 1], strides = [1, 1]} : vector<8x8xi32> to vector<8x1xi32>
    %65 = vector.broadcast %64 : vector<8x1xi32> to vector<8x32xi32>
    %66 = arith.cmpi eq, %65, %30 : vector<8x32xi32>
    %cst_38 = arith.constant 1.000000e+00 : f32
    %cst_39 = arith.constant 0.000000e+00 : f32
    %67 = vector.broadcast %cst_38 : f32 to vector<8x32xf32>
    %68 = vector.broadcast %cst_39 : f32 to vector<8x32xf32>
    %69 = arith.select %66, %67, %68 : vector<8x32xi1>, vector<8x32xf32>
    %70 = arith.truncf %69 : vector<8x32xf32> to vector<8x32xbf16>
    %cst_40 = arith.constant dense<0.000000e+00> : vector<8x128xf32>
    %71 = tpu.matmul %70, %28, %cst_40 {dimension_numbers = #tpu.dot_dimension_numbers<[1], [0], [0], [1], [0, 0, 1, 1], [], []>} : vector<8x32xbf16>, vector<32x128xbf16>, vector<8x128xf32> -> vector<8x128xf32>
    %c5 = arith.constant 5 : index
    %c0_41 = arith.constant 0 : index
    %c0_42 = arith.constant 0 : index
    %72 = vector.load %arg14[%c5, %c0_41, %c0_42] : memref<10x8x128xf32, #tpu.memory_space<vmem>>, vector<1x8x128xf32>
    %73 = vector.shape_cast %72 : vector<1x8x128xf32> to vector<8x128xf32>
    %74 = vector.shape_cast %71 : vector<8x128xf32> to vector<1x8x128xf32>
    tpu.vector_store %arg14[%c5, %c0_41, %c0_42], %74 {strides = array<i32>} : memref<10x8x128xf32, #tpu.memory_space<vmem>>, vector<1x8x128xf32>,
    %75 = vector.extract_strided_slice %29 {offsets = [0, 4], sizes = [8, 1], strides = [1, 1]} : vector<8x8xi32> to vector<8x1xi32>
    %76 = vector.broadcast %75 : vector<8x1xi32> to vector<8x32xi32>
    %77 = arith.cmpi eq, %76, %30 : vector<8x32xi32>
    %cst_43 = arith.constant 1.000000e+00 : f32
    %cst_44 = arith.constant 0.000000e+00 : f32
    %78 = vector.broadcast %cst_43 : f32 to vector<8x32xf32>
    %79 = vector.broadcast %cst_44 : f32 to vector<8x32xf32>
    %80 = arith.select %77, %78, %79 : vector<8x32xi1>, vector<8x32xf32>
    %81 = arith.truncf %80 : vector<8x32xf32> to vector<8x32xbf16>
    %cst_45 = arith.constant dense<0.000000e+00> : vector<8x128xf32>
    %82 = tpu.matmul %81, %28, %cst_45 {dimension_numbers = #tpu.dot_dimension_numbers<[1], [0], [0], [1], [0, 0, 1, 1], [], []>} : vector<8x32xbf16>, vector<32x128xbf16>, vector<8x128xf32> -> vector<8x128xf32>
    %c6 = arith.constant 6 : index
    %c0_46 = arith.constant 0 : index
    %c0_47 = arith.constant 0 : index
    %83 = vector.load %arg14[%c6, %c0_46, %c0_47] : memref<10x8x128xf32, #tpu.memory_space<vmem>>, vector<1x8x128xf32>
    %84 = vector.shape_cast %83 : vector<1x8x128xf32> to vector<8x128xf32>
    %85 = vector.shape_cast %82 : vector<8x128xf32> to vector<1x8x128xf32>
    tpu.vector_store %arg14[%c6, %c0_46, %c0_47], %85 {strides = array<i32>} : memref<10x8x128xf32, #tpu.memory_space<vmem>>, vector<1x8x128xf32>,
    %86 = vector.extract_strided_slice %29 {offsets = [0, 5], sizes = [8, 1], strides = [1, 1]} : vector<8x8xi32> to vector<8x1xi32>
    %87 = vector.broadcast %86 : vector<8x1xi32> to vector<8x32xi32>
    %88 = arith.cmpi eq, %87, %30 : vector<8x32xi32>
    %cst_48 = arith.constant 1.000000e+00 : f32
    %cst_49 = arith.constant 0.000000e+00 : f32
    %89 = vector.broadcast %cst_48 : f32 to vector<8x32xf32>
    %90 = vector.broadcast %cst_49 : f32 to vector<8x32xf32>
    %91 = arith.select %88, %89, %90 : vector<8x32xi1>, vector<8x32xf32>
    %92 = arith.truncf %91 : vector<8x32xf32> to vector<8x32xbf16>
    %cst_50 = arith.constant dense<0.000000e+00> : vector<8x128xf32>
    %93 = tpu.matmul %92, %28, %cst_50 {dimension_numbers = #tpu.dot_dimension_numbers<[1], [0], [0], [1], [0, 0, 1, 1], [], []>} : vector<8x32xbf16>, vector<32x128xbf16>, vector<8x128xf32> -> vector<8x128xf32>
    %c7 = arith.constant 7 : index
    %c0_51 = arith.constant 0 : index
    %c0_52 = arith.constant 0 : index
    %94 = vector.load %arg14[%c7, %c0_51, %c0_52] : memref<10x8x128xf32, #tpu.memory_space<vmem>>, vector<1x8x128xf32>
    %95 = vector.shape_cast %94 : vector<1x8x128xf32> to vector<8x128xf32>
    %96 = vector.shape_cast %93 : vector<8x128xf32> to vector<1x8x128xf32>
    tpu.vector_store %arg14[%c7, %c0_51, %c0_52], %96 {strides = array<i32>} : memref<10x8x128xf32, #tpu.memory_space<vmem>>, vector<1x8x128xf32>,
    %97 = vector.extract_strided_slice %29 {offsets = [0, 6], sizes = [8, 1], strides = [1, 1]} : vector<8x8xi32> to vector<8x1xi32>
    %98 = vector.broadcast %97 : vector<8x1xi32> to vector<8x32xi32>
    %99 = arith.cmpi eq, %98, %30 : vector<8x32xi32>
    %cst_53 = arith.constant 1.000000e+00 : f32
    %cst_54 = arith.constant 0.000000e+00 : f32
    %100 = vector.broadcast %cst_53 : f32 to vector<8x32xf32>
    %101 = vector.broadcast %cst_54 : f32 to vector<8x32xf32>
    %102 = arith.select %99, %100, %101 : vector<8x32xi1>, vector<8x32xf32>
    %103 = arith.truncf %102 : vector<8x32xf32> to vector<8x32xbf16>
    %cst_55 = arith.constant dense<0.000000e+00> : vector<8x128xf32>
    %104 = tpu.matmul %103, %28, %cst_55 {dimension_numbers = #tpu.dot_dimension_numbers<[1], [0], [0], [1], [0, 0, 1, 1], [], []>} : vector<8x32xbf16>, vector<32x128xbf16>, vector<8x128xf32> -> vector<8x128xf32>
    %c8 = arith.constant 8 : index
    %c0_56 = arith.constant 0 : index
    %c0_57 = arith.constant 0 : index
    %105 = vector.load %arg14[%c8, %c0_56, %c0_57] : memref<10x8x128xf32, #tpu.memory_space<vmem>>, vector<1x8x128xf32>
    %106 = vector.shape_cast %105 : vector<1x8x128xf32> to vector<8x128xf32>
    %107 = vector.shape_cast %104 : vector<8x128xf32> to vector<1x8x128xf32>
    tpu.vector_store %arg14[%c8, %c0_56, %c0_57], %107 {strides = array<i32>} : memref<10x8x128xf32, #tpu.memory_space<vmem>>, vector<1x8x128xf32>,
    %108 = vector.extract_strided_slice %29 {offsets = [0, 7], sizes = [8, 1], strides = [1, 1]} : vector<8x8xi32> to vector<8x1xi32>
    %109 = vector.broadcast %108 : vector<8x1xi32> to vector<8x32xi32>
    %110 = arith.cmpi eq, %109, %30 : vector<8x32xi32>
    %cst_58 = arith.constant 1.000000e+00 : f32
    %cst_59 = arith.constant 0.000000e+00 : f32
    %111 = vector.broadcast %cst_58 : f32 to vector<8x32xf32>
    %112 = vector.broadcast %cst_59 : f32 to vector<8x32xf32>
    %113 = arith.select %110, %111, %112 : vector<8x32xi1>, vector<8x32xf32>
    %114 = arith.truncf %113 : vector<8x32xf32> to vector<8x32xbf16>
    %cst_60 = arith.constant dense<0.000000e+00> : vector<8x128xf32>
    %115 = tpu.matmul %114, %28, %cst_60 {dimension_numbers = #tpu.dot_dimension_numbers<[1], [0], [0], [1], [0, 0, 1, 1], [], []>} : vector<8x32xbf16>, vector<32x128xbf16>, vector<8x128xf32> -> vector<8x128xf32>
    %c9 = arith.constant 9 : index
    %c0_61 = arith.constant 0 : index
    %c0_62 = arith.constant 0 : index
    %116 = vector.load %arg14[%c9, %c0_61, %c0_62] : memref<10x8x128xf32, #tpu.memory_space<vmem>>, vector<1x8x128xf32>
    %117 = vector.shape_cast %116 : vector<1x8x128xf32> to vector<8x128xf32>
    %118 = vector.shape_cast %115 : vector<8x128xf32> to vector<1x8x128xf32>
    tpu.vector_store %arg14[%c9, %c0_61, %c0_62], %118 {strides = array<i32>} : memref<10x8x128xf32, #tpu.memory_space<vmem>>, vector<1x8x128xf32>,
    %c0_63 = arith.constant 0 : index
    %c0_64 = arith.constant 0 : index
    %119 = vector.load %arg7[%c0_63, %c0_64] : memref<32x128xbf16, #tpu.memory_space<vmem>>, vector<32x128xbf16>
    %c0_65 = arith.constant 0 : index
    %c0_66 = arith.constant 0 : index
    %120 = vector.load %arg9[%c0_65, %c0_66] : memref<64x128xbf16, #tpu.memory_space<vmem>>, vector<64x128xbf16>
    %c0_67 = arith.constant 0 : index
    %c0_68 = arith.constant 0 : index
    %121 = vector.load %arg10[%c0_67, %c0_68] : memref<1x128xf32, #tpu.memory_space<vmem>>, vector<1x128xf32>
    %cst_69 = arith.constant 0.000000e+00 : bf16
    %122 = vector.broadcast %cst_69 : bf16 to vector<8x32xbf16>
    %cst_70 = arith.constant 0.000000e+00 : f32
    %123 = vector.broadcast %cst_70 : f32 to vector<8x32xf32>
    %cst_71 = arith.constant 0.000000e+00 : bf16
    %124 = vector.broadcast %cst_71 : bf16 to vector<8x32xbf16>
    %cst_72 = arith.constant 0.000000e+00 : f32
    %125 = vector.broadcast %cst_72 : f32 to vector<8x32xf32>
    %c0_73 = arith.constant 0 : index
    %c0_74 = arith.constant 0 : index
    %c0_75 = arith.constant 0 : index
    %126 = vector.load %arg14[%c0_73, %c0_74, %c0_75] : memref<10x8x128xf32, #tpu.memory_space<vmem>>, vector<1x8x128xf32>
    %127 = vector.shape_cast %126 : vector<1x8x128xf32> to vector<8x128xf32>
    %cst_76 = arith.constant dense<0.000000e+00> : vector<8x128xf32>
    %128 = tpu.matmul %122, %119, %cst_76 {dimension_numbers = #tpu.dot_dimension_numbers<[1], [0], [0], [1], [0, 0, 1, 1], [], []>} : vector<8x32xbf16>, vector<32x128xbf16>, vector<8x128xf32> -> vector<8x128xf32>
    %129 = arith.addf %127, %128 : vector<8x128xf32>
    %cst_77 = arith.constant 5.000000e-01 : f32
    %130 = vector.broadcast %cst_77 : f32 to vector<8x128xf32>
    %131 = arith.mulf %130, %129 : vector<8x128xf32>
    %132 = math.tanh %131 : vector<8x128xf32>
    %cst_78 = arith.constant 5.000000e-01 : f32
    %133 = vector.broadcast %cst_78 : f32 to vector<8x128xf32>
    %134 = arith.mulf %133, %132 : vector<8x128xf32>
    %cst_79 = arith.constant 5.000000e-01 : f32
    %135 = vector.broadcast %cst_79 : f32 to vector<8x128xf32>
    %136 = arith.addf %134, %135 : vector<8x128xf32>
    %137 = math.tanh %129 : vector<8x128xf32>
    %138 = vector.extract_strided_slice %136 {offsets = [0, 0], sizes = [8, 32], strides = [1, 1]} : vector<8x128xf32> to vector<8x32xf32>
    %139 = vector.extract_strided_slice %136 {offsets = [0, 32], sizes = [8, 32], strides = [1, 1]} : vector<8x128xf32> to vector<8x32xf32>
    %140 = vector.extract_strided_slice %137 {offsets = [0, 64], sizes = [8, 32], strides = [1, 1]} : vector<8x128xf32> to vector<8x32xf32>
    %141 = vector.extract_strided_slice %136 {offsets = [0, 96], sizes = [8, 32], strides = [1, 1]} : vector<8x128xf32> to vector<8x32xf32>
    %142 = arith.mulf %139, %123 : vector<8x32xf32>
    %143 = arith.mulf %138, %140 : vector<8x32xf32>
    %144 = arith.addf %142, %143 : vector<8x32xf32>
    %145 = math.tanh %144 : vector<8x32xf32>
    %146 = arith.mulf %141, %145 : vector<8x32xf32>
    %147 = arith.truncf %146 : vector<8x32xf32> to vector<8x32xbf16>
    %c1_80 = arith.constant 1 : index
    %c0_81 = arith.constant 0 : index
    %c0_82 = arith.constant 0 : index
    %148 = vector.load %arg14[%c1_80, %c0_81, %c0_82] : memref<10x8x128xf32, #tpu.memory_space<vmem>>, vector<1x8x128xf32>
    %149 = vector.shape_cast %148 : vector<1x8x128xf32> to vector<8x128xf32>
    %cst_83 = arith.constant dense<0.000000e+00> : vector<8x128xf32>
    %150 = tpu.matmul %147, %119, %cst_83 {dimension_numbers = #tpu.dot_dimension_numbers<[1], [0], [0], [1], [0, 0, 1, 1], [], []>} : vector<8x32xbf16>, vector<32x128xbf16>, vector<8x128xf32> -> vector<8x128xf32>
    %151 = arith.addf %149, %150 : vector<8x128xf32>
    %cst_84 = arith.constant 5.000000e-01 : f32
    %152 = vector.broadcast %cst_84 : f32 to vector<8x128xf32>
    %153 = arith.mulf %152, %151 : vector<8x128xf32>
    %154 = math.tanh %153 : vector<8x128xf32>
    %cst_85 = arith.constant 5.000000e-01 : f32
    %155 = vector.broadcast %cst_85 : f32 to vector<8x128xf32>
    %156 = arith.mulf %155, %154 : vector<8x128xf32>
    %cst_86 = arith.constant 5.000000e-01 : f32
    %157 = vector.broadcast %cst_86 : f32 to vector<8x128xf32>
    %158 = arith.addf %156, %157 : vector<8x128xf32>
    %159 = math.tanh %151 : vector<8x128xf32>
    %160 = vector.extract_strided_slice %158 {offsets = [0, 0], sizes = [8, 32], strides = [1, 1]} : vector<8x128xf32> to vector<8x32xf32>
    %161 = vector.extract_strided_slice %158 {offsets = [0, 32], sizes = [8, 32], strides = [1, 1]} : vector<8x128xf32> to vector<8x32xf32>
    %162 = vector.extract_strided_slice %159 {offsets = [0, 64], sizes = [8, 32], strides = [1, 1]} : vector<8x128xf32> to vector<8x32xf32>
    %163 = vector.extract_strided_slice %158 {offsets = [0, 96], sizes = [8, 32], strides = [1, 1]} : vector<8x128xf32> to vector<8x32xf32>
    %164 = arith.mulf %161, %144 : vector<8x32xf32>
    %165 = arith.mulf %160, %162 : vector<8x32xf32>
    %166 = arith.addf %164, %165 : vector<8x32xf32>
    %167 = math.tanh %166 : vector<8x32xf32>
    %168 = arith.mulf %163, %167 : vector<8x32xf32>
    %169 = arith.truncf %168 : vector<8x32xf32> to vector<8x32xbf16>
    %170 = tpu.concatenate %147, %124 in 1 : vector<8x32xbf16>, vector<8x32xbf16> -> vector<8x64xbf16>
    %cst_87 = arith.constant dense<0.000000e+00> : vector<8x128xf32>
    %171 = tpu.matmul %170, %120, %cst_87 {dimension_numbers = #tpu.dot_dimension_numbers<[1], [0], [0], [1], [0, 0, 1, 1], [], []>} : vector<8x64xbf16>, vector<64x128xbf16>, vector<8x128xf32> -> vector<8x128xf32>
    %172 = vector.broadcast %121 : vector<1x128xf32> to vector<8x128xf32>
    %173 = arith.addf %171, %172 : vector<8x128xf32>
    %cst_88 = arith.constant 5.000000e-01 : f32
    %174 = vector.broadcast %cst_88 : f32 to vector<8x128xf32>
    %175 = arith.mulf %174, %173 : vector<8x128xf32>
    %176 = math.tanh %175 : vector<8x128xf32>
    %cst_89 = arith.constant 5.000000e-01 : f32
    %177 = vector.broadcast %cst_89 : f32 to vector<8x128xf32>
    %178 = arith.mulf %177, %176 : vector<8x128xf32>
    %cst_90 = arith.constant 5.000000e-01 : f32
    %179 = vector.broadcast %cst_90 : f32 to vector<8x128xf32>
    %180 = arith.addf %178, %179 : vector<8x128xf32>
    %181 = math.tanh %173 : vector<8x128xf32>
    %182 = vector.extract_strided_slice %180 {offsets = [0, 0], sizes = [8, 32], strides = [1, 1]} : vector<8x128xf32> to vector<8x32xf32>
    %183 = vector.extract_strided_slice %180 {offsets = [0, 32], sizes = [8, 32], strides = [1, 1]} : vector<8x128xf32> to vector<8x32xf32>
    %184 = vector.extract_strided_slice %181 {offsets = [0, 64], sizes = [8, 32], strides = [1, 1]} : vector<8x128xf32> to vector<8x32xf32>
    %185 = vector.extract_strided_slice %180 {offsets = [0, 96], sizes = [8, 32], strides = [1, 1]} : vector<8x128xf32> to vector<8x32xf32>
    %186 = arith.mulf %183, %125 : vector<8x32xf32>
    %187 = arith.mulf %182, %184 : vector<8x32xf32>
    %188 = arith.addf %186, %187 : vector<8x32xf32>
    %189 = math.tanh %188 : vector<8x32xf32>
    %190 = arith.mulf %185, %189 : vector<8x32xf32>
    %191 = arith.truncf %190 : vector<8x32xf32> to vector<8x32xbf16>
    %c2_91 = arith.constant 2 : index
    %c0_92 = arith.constant 0 : index
    %c0_93 = arith.constant 0 : index
    %192 = vector.load %arg14[%c2_91, %c0_92, %c0_93] : memref<10x8x128xf32, #tpu.memory_space<vmem>>, vector<1x8x128xf32>
    %193 = vector.shape_cast %192 : vector<1x8x128xf32> to vector<8x128xf32>
    %cst_94 = arith.constant dense<0.000000e+00> : vector<8x128xf32>
    %194 = tpu.matmul %169, %119, %cst_94 {dimension_numbers = #tpu.dot_dimension_numbers<[1], [0], [0], [1], [0, 0, 1, 1], [], []>} : vector<8x32xbf16>, vector<32x128xbf16>, vector<8x128xf32> -> vector<8x128xf32>
    %195 = arith.addf %193, %194 : vector<8x128xf32>
    %cst_95 = arith.constant 5.000000e-01 : f32
    %196 = vector.broadcast %cst_95 : f32 to vector<8x128xf32>
    %197 = arith.mulf %196, %195 : vector<8x128xf32>
    %198 = math.tanh %197 : vector<8x128xf32>
    %cst_96 = arith.constant 5.000000e-01 : f32
    %199 = vector.broadcast %cst_96 : f32 to vector<8x128xf32>
    %200 = arith.mulf %199, %198 : vector<8x128xf32>
    %cst_97 = arith.constant 5.000000e-01 : f32
    %201 = vector.broadcast %cst_97 : f32 to vector<8x128xf32>
    %202 = arith.addf %200, %201 : vector<8x128xf32>
    %203 = math.tanh %195 : vector<8x128xf32>
    %204 = vector.extract_strided_slice %202 {offsets = [0, 0], sizes = [8, 32], strides = [1, 1]} : vector<8x128xf32> to vector<8x32xf32>
    %205 = vector.extract_strided_slice %202 {offsets = [0, 32], sizes = [8, 32], strides = [1, 1]} : vector<8x128xf32> to vector<8x32xf32>
    %206 = vector.extract_strided_slice %203 {offsets = [0, 64], sizes = [8, 32], strides = [1, 1]} : vector<8x128xf32> to vector<8x32xf32>
    %207 = vector.extract_strided_slice %202 {offsets = [0, 96], sizes = [8, 32], strides = [1, 1]} : vector<8x128xf32> to vector<8x32xf32>
    %208 = arith.mulf %205, %166 : vector<8x32xf32>
    %209 = arith.mulf %204, %206 : vector<8x32xf32>
    %210 = arith.addf %208, %209 : vector<8x32xf32>
    %211 = math.tanh %210 : vector<8x32xf32>
    %212 = arith.mulf %207, %211 : vector<8x32xf32>
    %213 = arith.truncf %212 : vector<8x32xf32> to vector<8x32xbf16>
    %214 = tpu.concatenate %169, %191 in 1 : vector<8x32xbf16>, vector<8x32xbf16> -> vector<8x64xbf16>
    %cst_98 = arith.constant dense<0.000000e+00> : vector<8x128xf32>
    %215 = tpu.matmul %214, %120, %cst_98 {dimension_numbers = #tpu.dot_dimension_numbers<[1], [0], [0], [1], [0, 0, 1, 1], [], []>} : vector<8x64xbf16>, vector<64x128xbf16>, vector<8x128xf32> -> vector<8x128xf32>
    %216 = vector.broadcast %121 : vector<1x128xf32> to vector<8x128xf32>
    %217 = arith.addf %215, %216 : vector<8x128xf32>
    %cst_99 = arith.constant 5.000000e-01 : f32
    %218 = vector.broadcast %cst_99 : f32 to vector<8x128xf32>
    %219 = arith.mulf %218, %217 : vector<8x128xf32>
    %220 = math.tanh %219 : vector<8x128xf32>
    %cst_100 = arith.constant 5.000000e-01 : f32
    %221 = vector.broadcast %cst_100 : f32 to vector<8x128xf32>
    %222 = arith.mulf %221, %220 : vector<8x128xf32>
    %cst_101 = arith.constant 5.000000e-01 : f32
    %223 = vector.broadcast %cst_101 : f32 to vector<8x128xf32>
    %224 = arith.addf %222, %223 : vector<8x128xf32>
    %225 = math.tanh %217 : vector<8x128xf32>
    %226 = vector.extract_strided_slice %224 {offsets = [0, 0], sizes = [8, 32], strides = [1, 1]} : vector<8x128xf32> to vector<8x32xf32>
    %227 = vector.extract_strided_slice %224 {offsets = [0, 32], sizes = [8, 32], strides = [1, 1]} : vector<8x128xf32> to vector<8x32xf32>
    %228 = vector.extract_strided_slice %225 {offsets = [0, 64], sizes = [8, 32], strides = [1, 1]} : vector<8x128xf32> to vector<8x32xf32>
    %229 = vector.extract_strided_slice %224 {offsets = [0, 96], sizes = [8, 32], strides = [1, 1]} : vector<8x128xf32> to vector<8x32xf32>
    %230 = arith.mulf %227, %188 : vector<8x32xf32>
    %231 = arith.mulf %226, %228 : vector<8x32xf32>
    %232 = arith.addf %230, %231 : vector<8x32xf32>
    %233 = math.tanh %232 : vector<8x32xf32>
    %234 = arith.mulf %229, %233 : vector<8x32xf32>
    %235 = arith.truncf %234 : vector<8x32xf32> to vector<8x32xbf16>
    %236 = arith.extf %235 : vector<8x32xbf16> to vector<8x32xf32>
    %c0_102 = arith.constant 0 : index
    %c0_103 = arith.constant 0 : index
    %c0_104 = arith.constant 0 : index
    %237 = vector.load %arg15[%c0_102, %c0_103, %c0_104] : memref<9x8x32xf32, #tpu.memory_space<vmem>>, vector<1x8x32xf32>
    %238 = vector.shape_cast %237 : vector<1x8x32xf32> to vector<8x32xf32>
    %239 = vector.shape_cast %236 : vector<8x32xf32> to vector<1x8x32xf32>
    tpu.vector_store %arg15[%c0_102, %c0_103, %c0_104], %239 {strides = array<i32>} : memref<9x8x32xf32, #tpu.memory_space<vmem>>, vector<1x8x32xf32>,
    %c3_105 = arith.constant 3 : index
    %c0_106 = arith.constant 0 : index
    %c0_107 = arith.constant 0 : index
    %240 = vector.load %arg14[%c3_105, %c0_106, %c0_107] : memref<10x8x128xf32, #tpu.memory_space<vmem>>, vector<1x8x128xf32>
    %241 = vector.shape_cast %240 : vector<1x8x128xf32> to vector<8x128xf32>
    %cst_108 = arith.constant dense<0.000000e+00> : vector<8x128xf32>
    %242 = tpu.matmul %213, %119, %cst_108 {dimension_numbers = #tpu.dot_dimension_numbers<[1], [0], [0], [1], [0, 0, 1, 1], [], []>} : vector<8x32xbf16>, vector<32x128xbf16>, vector<8x128xf32> -> vector<8x128xf32>
    %243 = arith.addf %241, %242 : vector<8x128xf32>
    %cst_109 = arith.constant 5.000000e-01 : f32
    %244 = vector.broadcast %cst_109 : f32 to vector<8x128xf32>
    %245 = arith.mulf %244, %243 : vector<8x128xf32>
    %246 = math.tanh %245 : vector<8x128xf32>
    %cst_110 = arith.constant 5.000000e-01 : f32
    %247 = vector.broadcast %cst_110 : f32 to vector<8x128xf32>
    %248 = arith.mulf %247, %246 : vector<8x128xf32>
    %cst_111 = arith.constant 5.000000e-01 : f32
    %249 = vector.broadcast %cst_111 : f32 to vector<8x128xf32>
    %250 = arith.addf %248, %249 : vector<8x128xf32>
    %251 = math.tanh %243 : vector<8x128xf32>
    %252 = vector.extract_strided_slice %250 {offsets = [0, 0], sizes = [8, 32], strides = [1, 1]} : vector<8x128xf32> to vector<8x32xf32>
    %253 = vector.extract_strided_slice %250 {offsets = [0, 32], sizes = [8, 32], strides = [1, 1]} : vector<8x128xf32> to vector<8x32xf32>
    %254 = vector.extract_strided_slice %251 {offsets = [0, 64], sizes = [8, 32], strides = [1, 1]} : vector<8x128xf32> to vector<8x32xf32>
    %255 = vector.extract_strided_slice %250 {offsets = [0, 96], sizes = [8, 32], strides = [1, 1]} : vector<8x128xf32> to vector<8x32xf32>
    %256 = arith.mulf %253, %210 : vector<8x32xf32>
    %257 = arith.mulf %252, %254 : vector<8x32xf32>
    %258 = arith.addf %256, %257 : vector<8x32xf32>
    %259 = math.tanh %258 : vector<8x32xf32>
    %260 = arith.mulf %255, %259 : vector<8x32xf32>
    %261 = arith.truncf %260 : vector<8x32xf32> to vector<8x32xbf16>
    %262 = tpu.concatenate %213, %235 in 1 : vector<8x32xbf16>, vector<8x32xbf16> -> vector<8x64xbf16>
    %cst_112 = arith.constant dense<0.000000e+00> : vector<8x128xf32>
    %263 = tpu.matmul %262, %120, %cst_112 {dimension_numbers = #tpu.dot_dimension_numbers<[1], [0], [0], [1], [0, 0, 1, 1], [], []>} : vector<8x64xbf16>, vector<64x128xbf16>, vector<8x128xf32> -> vector<8x128xf32>
    %264 = vector.broadcast %121 : vector<1x128xf32> to vector<8x128xf32>
    %265 = arith.addf %263, %264 : vector<8x128xf32>
    %cst_113 = arith.constant 5.000000e-01 : f32
    %266 = vector.broadcast %cst_113 : f32 to vector<8x128xf32>
    %267 = arith.mulf %266, %265 : vector<8x128xf32>
    %268 = math.tanh %267 : vector<8x128xf32>
    %cst_114 = arith.constant 5.000000e-01 : f32
    %269 = vector.broadcast %cst_114 : f32 to vector<8x128xf32>
    %270 = arith.mulf %269, %268 : vector<8x128xf32>
    %cst_115 = arith.constant 5.000000e-01 : f32
    %271 = vector.broadcast %cst_115 : f32 to vector<8x128xf32>
    %272 = arith.addf %270, %271 : vector<8x128xf32>
    %273 = math.tanh %265 : vector<8x128xf32>
    %274 = vector.extract_strided_slice %272 {offsets = [0, 0], sizes = [8, 32], strides = [1, 1]} : vector<8x128xf32> to vector<8x32xf32>
    %275 = vector.extract_strided_slice %272 {offsets = [0, 32], sizes = [8, 32], strides = [1, 1]} : vector<8x128xf32> to vector<8x32xf32>
    %276 = vector.extract_strided_slice %273 {offsets = [0, 64], sizes = [8, 32], strides = [1, 1]} : vector<8x128xf32> to vector<8x32xf32>
    %277 = vector.extract_strided_slice %272 {offsets = [0, 96], sizes = [8, 32], strides = [1, 1]} : vector<8x128xf32> to vector<8x32xf32>
    %278 = arith.mulf %275, %232 : vector<8x32xf32>
    %279 = arith.mulf %274, %276 : vector<8x32xf32>
    %280 = arith.addf %278, %279 : vector<8x32xf32>
    %281 = math.tanh %280 : vector<8x32xf32>
    %282 = arith.mulf %277, %281 : vector<8x32xf32>
    %283 = arith.truncf %282 : vector<8x32xf32> to vector<8x32xbf16>
    %284 = arith.extf %283 : vector<8x32xbf16> to vector<8x32xf32>
    %c1_116 = arith.constant 1 : index
    %c0_117 = arith.constant 0 : index
    %c0_118 = arith.constant 0 : index
    %285 = vector.load %arg15[%c1_116, %c0_117, %c0_118] : memref<9x8x32xf32, #tpu.memory_space<vmem>>, vector<1x8x32xf32>
    %286 = vector.shape_cast %285 : vector<1x8x32xf32> to vector<8x32xf32>
    %287 = vector.shape_cast %284 : vector<8x32xf32> to vector<1x8x32xf32>
    tpu.vector_store %arg15[%c1_116, %c0_117, %c0_118], %287 {strides = array<i32>} : memref<9x8x32xf32, #tpu.memory_space<vmem>>, vector<1x8x32xf32>,
    %c4_119 = arith.constant 4 : index
    %c0_120 = arith.constant 0 : index
    %c0_121 = arith.constant 0 : index
    %288 = vector.load %arg14[%c4_119, %c0_120, %c0_121] : memref<10x8x128xf32, #tpu.memory_space<vmem>>, vector<1x8x128xf32>
    %289 = vector.shape_cast %288 : vector<1x8x128xf32> to vector<8x128xf32>
    %cst_122 = arith.constant dense<0.000000e+00> : vector<8x128xf32>
    %290 = tpu.matmul %261, %119, %cst_122 {dimension_numbers = #tpu.dot_dimension_numbers<[1], [0], [0], [1], [0, 0, 1, 1], [], []>} : vector<8x32xbf16>, vector<32x128xbf16>, vector<8x128xf32> -> vector<8x128xf32>
    %291 = arith.addf %289, %290 : vector<8x128xf32>
    %cst_123 = arith.constant 5.000000e-01 : f32
    %292 = vector.broadcast %cst_123 : f32 to vector<8x128xf32>
    %293 = arith.mulf %292, %291 : vector<8x128xf32>
    %294 = math.tanh %293 : vector<8x128xf32>
    %cst_124 = arith.constant 5.000000e-01 : f32
    %295 = vector.broadcast %cst_124 : f32 to vector<8x128xf32>
    %296 = arith.mulf %295, %294 : vector<8x128xf32>
    %cst_125 = arith.constant 5.000000e-01 : f32
    %297 = vector.broadcast %cst_125 : f32 to vector<8x128xf32>
    %298 = arith.addf %296, %297 : vector<8x128xf32>
    %299 = math.tanh %291 : vector<8x128xf32>
    %300 = vector.extract_strided_slice %298 {offsets = [0, 0], sizes = [8, 32], strides = [1, 1]} : vector<8x128xf32> to vector<8x32xf32>
    %301 = vector.extract_strided_slice %298 {offsets = [0, 32], sizes = [8, 32], strides = [1, 1]} : vector<8x128xf32> to vector<8x32xf32>
    %302 = vector.extract_strided_slice %299 {offsets = [0, 64], sizes = [8, 32], strides = [1, 1]} : vector<8x128xf32> to vector<8x32xf32>
    %303 = vector.extract_strided_slice %298 {offsets = [0, 96], sizes = [8, 32], strides = [1, 1]} : vector<8x128xf32> to vector<8x32xf32>
    %304 = arith.mulf %301, %258 : vector<8x32xf32>
    %305 = arith.mulf %300, %302 : vector<8x32xf32>
    %306 = arith.addf %304, %305 : vector<8x32xf32>
    %307 = math.tanh %306 : vector<8x32xf32>
    %308 = arith.mulf %303, %307 : vector<8x32xf32>
    %309 = arith.truncf %308 : vector<8x32xf32> to vector<8x32xbf16>
    %310 = tpu.concatenate %261, %283 in 1 : vector<8x32xbf16>, vector<8x32xbf16> -> vector<8x64xbf16>
    %cst_126 = arith.constant dense<0.000000e+00> : vector<8x128xf32>
    %311 = tpu.matmul %310, %120, %cst_126 {dimension_numbers = #tpu.dot_dimension_numbers<[1], [0], [0], [1], [0, 0, 1, 1], [], []>} : vector<8x64xbf16>, vector<64x128xbf16>, vector<8x128xf32> -> vector<8x128xf32>
    %312 = vector.broadcast %121 : vector<1x128xf32> to vector<8x128xf32>
    %313 = arith.addf %311, %312 : vector<8x128xf32>
    %cst_127 = arith.constant 5.000000e-01 : f32
    %314 = vector.broadcast %cst_127 : f32 to vector<8x128xf32>
    %315 = arith.mulf %314, %313 : vector<8x128xf32>
    %316 = math.tanh %315 : vector<8x128xf32>
    %cst_128 = arith.constant 5.000000e-01 : f32
    %317 = vector.broadcast %cst_128 : f32 to vector<8x128xf32>
    %318 = arith.mulf %317, %316 : vector<8x128xf32>
    %cst_129 = arith.constant 5.000000e-01 : f32
    %319 = vector.broadcast %cst_129 : f32 to vector<8x128xf32>
    %320 = arith.addf %318, %319 : vector<8x128xf32>
    %321 = math.tanh %313 : vector<8x128xf32>
    %322 = vector.extract_strided_slice %320 {offsets = [0, 0], sizes = [8, 32], strides = [1, 1]} : vector<8x128xf32> to vector<8x32xf32>
    %323 = vector.extract_strided_slice %320 {offsets = [0, 32], sizes = [8, 32], strides = [1, 1]} : vector<8x128xf32> to vector<8x32xf32>
    %324 = vector.extract_strided_slice %321 {offsets = [0, 64], sizes = [8, 32], strides = [1, 1]} : vector<8x128xf32> to vector<8x32xf32>
    %325 = vector.extract_strided_slice %320 {offsets = [0, 96], sizes = [8, 32], strides = [1, 1]} : vector<8x128xf32> to vector<8x32xf32>
    %326 = arith.mulf %323, %280 : vector<8x32xf32>
    %327 = arith.mulf %322, %324 : vector<8x32xf32>
    %328 = arith.addf %326, %327 : vector<8x32xf32>
    %329 = math.tanh %328 : vector<8x32xf32>
    %330 = arith.mulf %325, %329 : vector<8x32xf32>
    %331 = arith.truncf %330 : vector<8x32xf32> to vector<8x32xbf16>
    %332 = arith.extf %331 : vector<8x32xbf16> to vector<8x32xf32>
    %c2_130 = arith.constant 2 : index
    %c0_131 = arith.constant 0 : index
    %c0_132 = arith.constant 0 : index
    %333 = vector.load %arg15[%c2_130, %c0_131, %c0_132] : memref<9x8x32xf32, #tpu.memory_space<vmem>>, vector<1x8x32xf32>
    %334 = vector.shape_cast %333 : vector<1x8x32xf32> to vector<8x32xf32>
    %335 = vector.shape_cast %332 : vector<8x32xf32> to vector<1x8x32xf32>
    tpu.vector_store %arg15[%c2_130, %c0_131, %c0_132], %335 {strides = array<i32>} : memref<9x8x32xf32, #tpu.memory_space<vmem>>, vector<1x8x32xf32>,
    %c5_133 = arith.constant 5 : index
    %c0_134 = arith.constant 0 : index
    %c0_135 = arith.constant 0 : index
    %336 = vector.load %arg14[%c5_133, %c0_134, %c0_135] : memref<10x8x128xf32, #tpu.memory_space<vmem>>, vector<1x8x128xf32>
    %337 = vector.shape_cast %336 : vector<1x8x128xf32> to vector<8x128xf32>
    %cst_136 = arith.constant dense<0.000000e+00> : vector<8x128xf32>
    %338 = tpu.matmul %309, %119, %cst_136 {dimension_numbers = #tpu.dot_dimension_numbers<[1], [0], [0], [1], [0, 0, 1, 1], [], []>} : vector<8x32xbf16>, vector<32x128xbf16>, vector<8x128xf32> -> vector<8x128xf32>
    %339 = arith.addf %337, %338 : vector<8x128xf32>
    %cst_137 = arith.constant 5.000000e-01 : f32
    %340 = vector.broadcast %cst_137 : f32 to vector<8x128xf32>
    %341 = arith.mulf %340, %339 : vector<8x128xf32>
    %342 = math.tanh %341 : vector<8x128xf32>
    %cst_138 = arith.constant 5.000000e-01 : f32
    %343 = vector.broadcast %cst_138 : f32 to vector<8x128xf32>
    %344 = arith.mulf %343, %342 : vector<8x128xf32>
    %cst_139 = arith.constant 5.000000e-01 : f32
    %345 = vector.broadcast %cst_139 : f32 to vector<8x128xf32>
    %346 = arith.addf %344, %345 : vector<8x128xf32>
    %347 = math.tanh %339 : vector<8x128xf32>
    %348 = vector.extract_strided_slice %346 {offsets = [0, 0], sizes = [8, 32], strides = [1, 1]} : vector<8x128xf32> to vector<8x32xf32>
    %349 = vector.extract_strided_slice %346 {offsets = [0, 32], sizes = [8, 32], strides = [1, 1]} : vector<8x128xf32> to vector<8x32xf32>
    %350 = vector.extract_strided_slice %347 {offsets = [0, 64], sizes = [8, 32], strides = [1, 1]} : vector<8x128xf32> to vector<8x32xf32>
    %351 = vector.extract_strided_slice %346 {offsets = [0, 96], sizes = [8, 32], strides = [1, 1]} : vector<8x128xf32> to vector<8x32xf32>
    %352 = arith.mulf %349, %306 : vector<8x32xf32>
    %353 = arith.mulf %348, %350 : vector<8x32xf32>
    %354 = arith.addf %352, %353 : vector<8x32xf32>
    %355 = math.tanh %354 : vector<8x32xf32>
    %356 = arith.mulf %351, %355 : vector<8x32xf32>
    %357 = arith.truncf %356 : vector<8x32xf32> to vector<8x32xbf16>
    %358 = tpu.concatenate %309, %331 in 1 : vector<8x32xbf16>, vector<8x32xbf16> -> vector<8x64xbf16>
    %cst_140 = arith.constant dense<0.000000e+00> : vector<8x128xf32>
    %359 = tpu.matmul %358, %120, %cst_140 {dimension_numbers = #tpu.dot_dimension_numbers<[1], [0], [0], [1], [0, 0, 1, 1], [], []>} : vector<8x64xbf16>, vector<64x128xbf16>, vector<8x128xf32> -> vector<8x128xf32>
    %360 = vector.broadcast %121 : vector<1x128xf32> to vector<8x128xf32>
    %361 = arith.addf %359, %360 : vector<8x128xf32>
    %cst_141 = arith.constant 5.000000e-01 : f32
    %362 = vector.broadcast %cst_141 : f32 to vector<8x128xf32>
    %363 = arith.mulf %362, %361 : vector<8x128xf32>
    %364 = math.tanh %363 : vector<8x128xf32>
    %cst_142 = arith.constant 5.000000e-01 : f32
    %365 = vector.broadcast %cst_142 : f32 to vector<8x128xf32>
    %366 = arith.mulf %365, %364 : vector<8x128xf32>
    %cst_143 = arith.constant 5.000000e-01 : f32
    %367 = vector.broadcast %cst_143 : f32 to vector<8x128xf32>
    %368 = arith.addf %366, %367 : vector<8x128xf32>
    %369 = math.tanh %361 : vector<8x128xf32>
    %370 = vector.extract_strided_slice %368 {offsets = [0, 0], sizes = [8, 32], strides = [1, 1]} : vector<8x128xf32> to vector<8x32xf32>
    %371 = vector.extract_strided_slice %368 {offsets = [0, 32], sizes = [8, 32], strides = [1, 1]} : vector<8x128xf32> to vector<8x32xf32>
    %372 = vector.extract_strided_slice %369 {offsets = [0, 64], sizes = [8, 32], strides = [1, 1]} : vector<8x128xf32> to vector<8x32xf32>
    %373 = vector.extract_strided_slice %368 {offsets = [0, 96], sizes = [8, 32], strides = [1, 1]} : vector<8x128xf32> to vector<8x32xf32>
    %374 = arith.mulf %371, %328 : vector<8x32xf32>
    %375 = arith.mulf %370, %372 : vector<8x32xf32>
    %376 = arith.addf %374, %375 : vector<8x32xf32>
    %377 = math.tanh %376 : vector<8x32xf32>
    %378 = arith.mulf %373, %377 : vector<8x32xf32>
    %379 = arith.truncf %378 : vector<8x32xf32> to vector<8x32xbf16>
    %380 = arith.extf %379 : vector<8x32xbf16> to vector<8x32xf32>
    %c3_144 = arith.constant 3 : index
    %c0_145 = arith.constant 0 : index
    %c0_146 = arith.constant 0 : index
    %381 = vector.load %arg15[%c3_144, %c0_145, %c0_146] : memref<9x8x32xf32, #tpu.memory_space<vmem>>, vector<1x8x32xf32>
    %382 = vector.shape_cast %381 : vector<1x8x32xf32> to vector<8x32xf32>
    %383 = vector.shape_cast %380 : vector<8x32xf32> to vector<1x8x32xf32>
    tpu.vector_store %arg15[%c3_144, %c0_145, %c0_146], %383 {strides = array<i32>} : memref<9x8x32xf32, #tpu.memory_space<vmem>>, vector<1x8x32xf32>,
    %c6_147 = arith.constant 6 : index
    %c0_148 = arith.constant 0 : index
    %c0_149 = arith.constant 0 : index
    %384 = vector.load %arg14[%c6_147, %c0_148, %c0_149] : memref<10x8x128xf32, #tpu.memory_space<vmem>>, vector<1x8x128xf32>
    %385 = vector.shape_cast %384 : vector<1x8x128xf32> to vector<8x128xf32>
    %cst_150 = arith.constant dense<0.000000e+00> : vector<8x128xf32>
    %386 = tpu.matmul %357, %119, %cst_150 {dimension_numbers = #tpu.dot_dimension_numbers<[1], [0], [0], [1], [0, 0, 1, 1], [], []>} : vector<8x32xbf16>, vector<32x128xbf16>, vector<8x128xf32> -> vector<8x128xf32>
    %387 = arith.addf %385, %386 : vector<8x128xf32>
    %cst_151 = arith.constant 5.000000e-01 : f32
    %388 = vector.broadcast %cst_151 : f32 to vector<8x128xf32>
    %389 = arith.mulf %388, %387 : vector<8x128xf32>
    %390 = math.tanh %389 : vector<8x128xf32>
    %cst_152 = arith.constant 5.000000e-01 : f32
    %391 = vector.broadcast %cst_152 : f32 to vector<8x128xf32>
    %392 = arith.mulf %391, %390 : vector<8x128xf32>
    %cst_153 = arith.constant 5.000000e-01 : f32
    %393 = vector.broadcast %cst_153 : f32 to vector<8x128xf32>
    %394 = arith.addf %392, %393 : vector<8x128xf32>
    %395 = math.tanh %387 : vector<8x128xf32>
    %396 = vector.extract_strided_slice %394 {offsets = [0, 0], sizes = [8, 32], strides = [1, 1]} : vector<8x128xf32> to vector<8x32xf32>
    %397 = vector.extract_strided_slice %394 {offsets = [0, 32], sizes = [8, 32], strides = [1, 1]} : vector<8x128xf32> to vector<8x32xf32>
    %398 = vector.extract_strided_slice %395 {offsets = [0, 64], sizes = [8, 32], strides = [1, 1]} : vector<8x128xf32> to vector<8x32xf32>
    %399 = vector.extract_strided_slice %394 {offsets = [0, 96], sizes = [8, 32], strides = [1, 1]} : vector<8x128xf32> to vector<8x32xf32>
    %400 = arith.mulf %397, %354 : vector<8x32xf32>
    %401 = arith.mulf %396, %398 : vector<8x32xf32>
    %402 = arith.addf %400, %401 : vector<8x32xf32>
    %403 = math.tanh %402 : vector<8x32xf32>
    %404 = arith.mulf %399, %403 : vector<8x32xf32>
    %405 = arith.truncf %404 : vector<8x32xf32> to vector<8x32xbf16>
    %406 = tpu.concatenate %357, %379 in 1 : vector<8x32xbf16>, vector<8x32xbf16> -> vector<8x64xbf16>
    %cst_154 = arith.constant dense<0.000000e+00> : vector<8x128xf32>
    %407 = tpu.matmul %406, %120, %cst_154 {dimension_numbers = #tpu.dot_dimension_numbers<[1], [0], [0], [1], [0, 0, 1, 1], [], []>} : vector<8x64xbf16>, vector<64x128xbf16>, vector<8x128xf32> -> vector<8x128xf32>
    %408 = vector.broadcast %121 : vector<1x128xf32> to vector<8x128xf32>
    %409 = arith.addf %407, %408 : vector<8x128xf32>
    %cst_155 = arith.constant 5.000000e-01 : f32
    %410 = vector.broadcast %cst_155 : f32 to vector<8x128xf32>
    %411 = arith.mulf %410, %409 : vector<8x128xf32>
    %412 = math.tanh %411 : vector<8x128xf32>
    %cst_156 = arith.constant 5.000000e-01 : f32
    %413 = vector.broadcast %cst_156 : f32 to vector<8x128xf32>
    %414 = arith.mulf %413, %412 : vector<8x128xf32>
    %cst_157 = arith.constant 5.000000e-01 : f32
    %415 = vector.broadcast %cst_157 : f32 to vector<8x128xf32>
    %416 = arith.addf %414, %415 : vector<8x128xf32>
    %417 = math.tanh %409 : vector<8x128xf32>
    %418 = vector.extract_strided_slice %416 {offsets = [0, 0], sizes = [8, 32], strides = [1, 1]} : vector<8x128xf32> to vector<8x32xf32>
    %419 = vector.extract_strided_slice %416 {offsets = [0, 32], sizes = [8, 32], strides = [1, 1]} : vector<8x128xf32> to vector<8x32xf32>
    %420 = vector.extract_strided_slice %417 {offsets = [0, 64], sizes = [8, 32], strides = [1, 1]} : vector<8x128xf32> to vector<8x32xf32>
    %421 = vector.extract_strided_slice %416 {offsets = [0, 96], sizes = [8, 32], strides = [1, 1]} : vector<8x128xf32> to vector<8x32xf32>
    %422 = arith.mulf %419, %376 : vector<8x32xf32>
    %423 = arith.mulf %418, %420 : vector<8x32xf32>
    %424 = arith.addf %422, %423 : vector<8x32xf32>
    %425 = math.tanh %424 : vector<8x32xf32>
    %426 = arith.mulf %421, %425 : vector<8x32xf32>
    %427 = arith.truncf %426 : vector<8x32xf32> to vector<8x32xbf16>
    %428 = arith.extf %427 : vector<8x32xbf16> to vector<8x32xf32>
    %c4_158 = arith.constant 4 : index
    %c0_159 = arith.constant 0 : index
    %c0_160 = arith.constant 0 : index
    %429 = vector.load %arg15[%c4_158, %c0_159, %c0_160] : memref<9x8x32xf32, #tpu.memory_space<vmem>>, vector<1x8x32xf32>
    %430 = vector.shape_cast %429 : vector<1x8x32xf32> to vector<8x32xf32>
    %431 = vector.shape_cast %428 : vector<8x32xf32> to vector<1x8x32xf32>
    tpu.vector_store %arg15[%c4_158, %c0_159, %c0_160], %431 {strides = array<i32>} : memref<9x8x32xf32, #tpu.memory_space<vmem>>, vector<1x8x32xf32>,
    %c7_161 = arith.constant 7 : index
    %c0_162 = arith.constant 0 : index
    %c0_163 = arith.constant 0 : index
    %432 = vector.load %arg14[%c7_161, %c0_162, %c0_163] : memref<10x8x128xf32, #tpu.memory_space<vmem>>, vector<1x8x128xf32>
    %433 = vector.shape_cast %432 : vector<1x8x128xf32> to vector<8x128xf32>
    %cst_164 = arith.constant dense<0.000000e+00> : vector<8x128xf32>
    %434 = tpu.matmul %405, %119, %cst_164 {dimension_numbers = #tpu.dot_dimension_numbers<[1], [0], [0], [1], [0, 0, 1, 1], [], []>} : vector<8x32xbf16>, vector<32x128xbf16>, vector<8x128xf32> -> vector<8x128xf32>
    %435 = arith.addf %433, %434 : vector<8x128xf32>
    %cst_165 = arith.constant 5.000000e-01 : f32
    %436 = vector.broadcast %cst_165 : f32 to vector<8x128xf32>
    %437 = arith.mulf %436, %435 : vector<8x128xf32>
    %438 = math.tanh %437 : vector<8x128xf32>
    %cst_166 = arith.constant 5.000000e-01 : f32
    %439 = vector.broadcast %cst_166 : f32 to vector<8x128xf32>
    %440 = arith.mulf %439, %438 : vector<8x128xf32>
    %cst_167 = arith.constant 5.000000e-01 : f32
    %441 = vector.broadcast %cst_167 : f32 to vector<8x128xf32>
    %442 = arith.addf %440, %441 : vector<8x128xf32>
    %443 = math.tanh %435 : vector<8x128xf32>
    %444 = vector.extract_strided_slice %442 {offsets = [0, 0], sizes = [8, 32], strides = [1, 1]} : vector<8x128xf32> to vector<8x32xf32>
    %445 = vector.extract_strided_slice %442 {offsets = [0, 32], sizes = [8, 32], strides = [1, 1]} : vector<8x128xf32> to vector<8x32xf32>
    %446 = vector.extract_strided_slice %443 {offsets = [0, 64], sizes = [8, 32], strides = [1, 1]} : vector<8x128xf32> to vector<8x32xf32>
    %447 = vector.extract_strided_slice %442 {offsets = [0, 96], sizes = [8, 32], strides = [1, 1]} : vector<8x128xf32> to vector<8x32xf32>
    %448 = arith.mulf %445, %402 : vector<8x32xf32>
    %449 = arith.mulf %444, %446 : vector<8x32xf32>
    %450 = arith.addf %448, %449 : vector<8x32xf32>
    %451 = math.tanh %450 : vector<8x32xf32>
    %452 = arith.mulf %447, %451 : vector<8x32xf32>
    %453 = arith.truncf %452 : vector<8x32xf32> to vector<8x32xbf16>
    %454 = tpu.concatenate %405, %427 in 1 : vector<8x32xbf16>, vector<8x32xbf16> -> vector<8x64xbf16>
    %cst_168 = arith.constant dense<0.000000e+00> : vector<8x128xf32>
    %455 = tpu.matmul %454, %120, %cst_168 {dimension_numbers = #tpu.dot_dimension_numbers<[1], [0], [0], [1], [0, 0, 1, 1], [], []>} : vector<8x64xbf16>, vector<64x128xbf16>, vector<8x128xf32> -> vector<8x128xf32>
    %456 = vector.broadcast %121 : vector<1x128xf32> to vector<8x128xf32>
    %457 = arith.addf %455, %456 : vector<8x128xf32>
    %cst_169 = arith.constant 5.000000e-01 : f32
    %458 = vector.broadcast %cst_169 : f32 to vector<8x128xf32>
    %459 = arith.mulf %458, %457 : vector<8x128xf32>
    %460 = math.tanh %459 : vector<8x128xf32>
    %cst_170 = arith.constant 5.000000e-01 : f32
    %461 = vector.broadcast %cst_170 : f32 to vector<8x128xf32>
    %462 = arith.mulf %461, %460 : vector<8x128xf32>
    %cst_171 = arith.constant 5.000000e-01 : f32
    %463 = vector.broadcast %cst_171 : f32 to vector<8x128xf32>
    %464 = arith.addf %462, %463 : vector<8x128xf32>
    %465 = math.tanh %457 : vector<8x128xf32>
    %466 = vector.extract_strided_slice %464 {offsets = [0, 0], sizes = [8, 32], strides = [1, 1]} : vector<8x128xf32> to vector<8x32xf32>
    %467 = vector.extract_strided_slice %464 {offsets = [0, 32], sizes = [8, 32], strides = [1, 1]} : vector<8x128xf32> to vector<8x32xf32>
    %468 = vector.extract_strided_slice %465 {offsets = [0, 64], sizes = [8, 32], strides = [1, 1]} : vector<8x128xf32> to vector<8x32xf32>
    %469 = vector.extract_strided_slice %464 {offsets = [0, 96], sizes = [8, 32], strides = [1, 1]} : vector<8x128xf32> to vector<8x32xf32>
    %470 = arith.mulf %467, %424 : vector<8x32xf32>
    %471 = arith.mulf %466, %468 : vector<8x32xf32>
    %472 = arith.addf %470, %471 : vector<8x32xf32>
    %473 = math.tanh %472 : vector<8x32xf32>
    %474 = arith.mulf %469, %473 : vector<8x32xf32>
    %475 = arith.truncf %474 : vector<8x32xf32> to vector<8x32xbf16>
    %476 = arith.extf %475 : vector<8x32xbf16> to vector<8x32xf32>
    %c5_172 = arith.constant 5 : index
    %c0_173 = arith.constant 0 : index
    %c0_174 = arith.constant 0 : index
    %477 = vector.load %arg15[%c5_172, %c0_173, %c0_174] : memref<9x8x32xf32, #tpu.memory_space<vmem>>, vector<1x8x32xf32>
    %478 = vector.shape_cast %477 : vector<1x8x32xf32> to vector<8x32xf32>
    %479 = vector.shape_cast %476 : vector<8x32xf32> to vector<1x8x32xf32>
    tpu.vector_store %arg15[%c5_172, %c0_173, %c0_174], %479 {strides = array<i32>} : memref<9x8x32xf32, #tpu.memory_space<vmem>>, vector<1x8x32xf32>,
    %c8_175 = arith.constant 8 : index
    %c0_176 = arith.constant 0 : index
    %c0_177 = arith.constant 0 : index
    %480 = vector.load %arg14[%c8_175, %c0_176, %c0_177] : memref<10x8x128xf32, #tpu.memory_space<vmem>>, vector<1x8x128xf32>
    %481 = vector.shape_cast %480 : vector<1x8x128xf32> to vector<8x128xf32>
    %cst_178 = arith.constant dense<0.000000e+00> : vector<8x128xf32>
    %482 = tpu.matmul %453, %119, %cst_178 {dimension_numbers = #tpu.dot_dimension_numbers<[1], [0], [0], [1], [0, 0, 1, 1], [], []>} : vector<8x32xbf16>, vector<32x128xbf16>, vector<8x128xf32> -> vector<8x128xf32>
    %483 = arith.addf %481, %482 : vector<8x128xf32>
    %cst_179 = arith.constant 5.000000e-01 : f32
    %484 = vector.broadcast %cst_179 : f32 to vector<8x128xf32>
    %485 = arith.mulf %484, %483 : vector<8x128xf32>
    %486 = math.tanh %485 : vector<8x128xf32>
    %cst_180 = arith.constant 5.000000e-01 : f32
    %487 = vector.broadcast %cst_180 : f32 to vector<8x128xf32>
    %488 = arith.mulf %487, %486 : vector<8x128xf32>
    %cst_181 = arith.constant 5.000000e-01 : f32
    %489 = vector.broadcast %cst_181 : f32 to vector<8x128xf32>
    %490 = arith.addf %488, %489 : vector<8x128xf32>
    %491 = math.tanh %483 : vector<8x128xf32>
    %492 = vector.extract_strided_slice %490 {offsets = [0, 0], sizes = [8, 32], strides = [1, 1]} : vector<8x128xf32> to vector<8x32xf32>
    %493 = vector.extract_strided_slice %490 {offsets = [0, 32], sizes = [8, 32], strides = [1, 1]} : vector<8x128xf32> to vector<8x32xf32>
    %494 = vector.extract_strided_slice %491 {offsets = [0, 64], sizes = [8, 32], strides = [1, 1]} : vector<8x128xf32> to vector<8x32xf32>
    %495 = vector.extract_strided_slice %490 {offsets = [0, 96], sizes = [8, 32], strides = [1, 1]} : vector<8x128xf32> to vector<8x32xf32>
    %496 = arith.mulf %493, %450 : vector<8x32xf32>
    %497 = arith.mulf %492, %494 : vector<8x32xf32>
    %498 = arith.addf %496, %497 : vector<8x32xf32>
    %499 = math.tanh %498 : vector<8x32xf32>
    %500 = arith.mulf %495, %499 : vector<8x32xf32>
    %501 = arith.truncf %500 : vector<8x32xf32> to vector<8x32xbf16>
    %502 = tpu.concatenate %453, %475 in 1 : vector<8x32xbf16>, vector<8x32xbf16> -> vector<8x64xbf16>
    %cst_182 = arith.constant dense<0.000000e+00> : vector<8x128xf32>
    %503 = tpu.matmul %502, %120, %cst_182 {dimension_numbers = #tpu.dot_dimension_numbers<[1], [0], [0], [1], [0, 0, 1, 1], [], []>} : vector<8x64xbf16>, vector<64x128xbf16>, vector<8x128xf32> -> vector<8x128xf32>
    %504 = vector.broadcast %121 : vector<1x128xf32> to vector<8x128xf32>
    %505 = arith.addf %503, %504 : vector<8x128xf32>
    %cst_183 = arith.constant 5.000000e-01 : f32
    %506 = vector.broadcast %cst_183 : f32 to vector<8x128xf32>
    %507 = arith.mulf %506, %505 : vector<8x128xf32>
    %508 = math.tanh %507 : vector<8x128xf32>
    %cst_184 = arith.constant 5.000000e-01 : f32
    %509 = vector.broadcast %cst_184 : f32 to vector<8x128xf32>
    %510 = arith.mulf %509, %508 : vector<8x128xf32>
    %cst_185 = arith.constant 5.000000e-01 : f32
    %511 = vector.broadcast %cst_185 : f32 to vector<8x128xf32>
    %512 = arith.addf %510, %511 : vector<8x128xf32>
    %513 = math.tanh %505 : vector<8x128xf32>
    %514 = vector.extract_strided_slice %512 {offsets = [0, 0], sizes = [8, 32], strides = [1, 1]} : vector<8x128xf32> to vector<8x32xf32>
    %515 = vector.extract_strided_slice %512 {offsets = [0, 32], sizes = [8, 32], strides = [1, 1]} : vector<8x128xf32> to vector<8x32xf32>
    %516 = vector.extract_strided_slice %513 {offsets = [0, 64], sizes = [8, 32], strides = [1, 1]} : vector<8x128xf32> to vector<8x32xf32>
    %517 = vector.extract_strided_slice %512 {offsets = [0, 96], sizes = [8, 32], strides = [1, 1]} : vector<8x128xf32> to vector<8x32xf32>
    %518 = arith.mulf %515, %472 : vector<8x32xf32>
    %519 = arith.mulf %514, %516 : vector<8x32xf32>
    %520 = arith.addf %518, %519 : vector<8x32xf32>
    %521 = math.tanh %520 : vector<8x32xf32>
    %522 = arith.mulf %517, %521 : vector<8x32xf32>
    %523 = arith.truncf %522 : vector<8x32xf32> to vector<8x32xbf16>
    %524 = arith.extf %523 : vector<8x32xbf16> to vector<8x32xf32>
    %c6_186 = arith.constant 6 : index
    %c0_187 = arith.constant 0 : index
    %c0_188 = arith.constant 0 : index
    %525 = vector.load %arg15[%c6_186, %c0_187, %c0_188] : memref<9x8x32xf32, #tpu.memory_space<vmem>>, vector<1x8x32xf32>
    %526 = vector.shape_cast %525 : vector<1x8x32xf32> to vector<8x32xf32>
    %527 = vector.shape_cast %524 : vector<8x32xf32> to vector<1x8x32xf32>
    tpu.vector_store %arg15[%c6_186, %c0_187, %c0_188], %527 {strides = array<i32>} : memref<9x8x32xf32, #tpu.memory_space<vmem>>, vector<1x8x32xf32>,
    %c9_189 = arith.constant 9 : index
    %c0_190 = arith.constant 0 : index
    %c0_191 = arith.constant 0 : index
    %528 = vector.load %arg14[%c9_189, %c0_190, %c0_191] : memref<10x8x128xf32, #tpu.memory_space<vmem>>, vector<1x8x128xf32>
    %529 = vector.shape_cast %528 : vector<1x8x128xf32> to vector<8x128xf32>
    %cst_192 = arith.constant dense<0.000000e+00> : vector<8x128xf32>
    %530 = tpu.matmul %501, %119, %cst_192 {dimension_numbers = #tpu.dot_dimension_numbers<[1], [0], [0], [1], [0, 0, 1, 1], [], []>} : vector<8x32xbf16>, vector<32x128xbf16>, vector<8x128xf32> -> vector<8x128xf32>
    %531 = arith.addf %529, %530 : vector<8x128xf32>
    %cst_193 = arith.constant 5.000000e-01 : f32
    %532 = vector.broadcast %cst_193 : f32 to vector<8x128xf32>
    %533 = arith.mulf %532, %531 : vector<8x128xf32>
    %534 = math.tanh %533 : vector<8x128xf32>
    %cst_194 = arith.constant 5.000000e-01 : f32
    %535 = vector.broadcast %cst_194 : f32 to vector<8x128xf32>
    %536 = arith.mulf %535, %534 : vector<8x128xf32>
    %cst_195 = arith.constant 5.000000e-01 : f32
    %537 = vector.broadcast %cst_195 : f32 to vector<8x128xf32>
    %538 = arith.addf %536, %537 : vector<8x128xf32>
    %539 = math.tanh %531 : vector<8x128xf32>
    %540 = vector.extract_strided_slice %538 {offsets = [0, 0], sizes = [8, 32], strides = [1, 1]} : vector<8x128xf32> to vector<8x32xf32>
    %541 = vector.extract_strided_slice %538 {offsets = [0, 32], sizes = [8, 32], strides = [1, 1]} : vector<8x128xf32> to vector<8x32xf32>
    %542 = vector.extract_strided_slice %539 {offsets = [0, 64], sizes = [8, 32], strides = [1, 1]} : vector<8x128xf32> to vector<8x32xf32>
    %543 = vector.extract_strided_slice %538 {offsets = [0, 96], sizes = [8, 32], strides = [1, 1]} : vector<8x128xf32> to vector<8x32xf32>
    %544 = arith.mulf %541, %498 : vector<8x32xf32>
    %545 = arith.mulf %540, %542 : vector<8x32xf32>
    %546 = arith.addf %544, %545 : vector<8x32xf32>
    %547 = math.tanh %546 : vector<8x32xf32>
    %548 = arith.mulf %543, %547 : vector<8x32xf32>
    %549 = arith.truncf %548 : vector<8x32xf32> to vector<8x32xbf16>
    %550 = tpu.concatenate %501, %523 in 1 : vector<8x32xbf16>, vector<8x32xbf16> -> vector<8x64xbf16>
    %cst_196 = arith.constant dense<0.000000e+00> : vector<8x128xf32>
    %551 = tpu.matmul %550, %120, %cst_196 {dimension_numbers = #tpu.dot_dimension_numbers<[1], [0], [0], [1], [0, 0, 1, 1], [], []>} : vector<8x64xbf16>, vector<64x128xbf16>, vector<8x128xf32> -> vector<8x128xf32>
    %552 = vector.broadcast %121 : vector<1x128xf32> to vector<8x128xf32>
    %553 = arith.addf %551, %552 : vector<8x128xf32>
    %cst_197 = arith.constant 5.000000e-01 : f32
    %554 = vector.broadcast %cst_197 : f32 to vector<8x128xf32>
    %555 = arith.mulf %554, %553 : vector<8x128xf32>
    %556 = math.tanh %555 : vector<8x128xf32>
    %cst_198 = arith.constant 5.000000e-01 : f32
    %557 = vector.broadcast %cst_198 : f32 to vector<8x128xf32>
    %558 = arith.mulf %557, %556 : vector<8x128xf32>
    %cst_199 = arith.constant 5.000000e-01 : f32
    %559 = vector.broadcast %cst_199 : f32 to vector<8x128xf32>
    %560 = arith.addf %558, %559 : vector<8x128xf32>
    %561 = math.tanh %553 : vector<8x128xf32>
    %562 = vector.extract_strided_slice %560 {offsets = [0, 0], sizes = [8, 32], strides = [1, 1]} : vector<8x128xf32> to vector<8x32xf32>
    %563 = vector.extract_strided_slice %560 {offsets = [0, 32], sizes = [8, 32], strides = [1, 1]} : vector<8x128xf32> to vector<8x32xf32>
    %564 = vector.extract_strided_slice %561 {offsets = [0, 64], sizes = [8, 32], strides = [1, 1]} : vector<8x128xf32> to vector<8x32xf32>
    %565 = vector.extract_strided_slice %560 {offsets = [0, 96], sizes = [8, 32], strides = [1, 1]} : vector<8x128xf32> to vector<8x32xf32>
    %566 = arith.mulf %563, %520 : vector<8x32xf32>
    %567 = arith.mulf %562, %564 : vector<8x32xf32>
    %568 = arith.addf %566, %567 : vector<8x32xf32>
    %569 = math.tanh %568 : vector<8x32xf32>
    %570 = arith.mulf %565, %569 : vector<8x32xf32>
    %571 = arith.truncf %570 : vector<8x32xf32> to vector<8x32xbf16>
    %572 = arith.extf %571 : vector<8x32xbf16> to vector<8x32xf32>
    %c7_200 = arith.constant 7 : index
    %c0_201 = arith.constant 0 : index
    %c0_202 = arith.constant 0 : index
    %573 = vector.load %arg15[%c7_200, %c0_201, %c0_202] : memref<9x8x32xf32, #tpu.memory_space<vmem>>, vector<1x8x32xf32>
    %574 = vector.shape_cast %573 : vector<1x8x32xf32> to vector<8x32xf32>
    %575 = vector.shape_cast %572 : vector<8x32xf32> to vector<1x8x32xf32>
    tpu.vector_store %arg15[%c7_200, %c0_201, %c0_202], %575 {strides = array<i32>} : memref<9x8x32xf32, #tpu.memory_space<vmem>>, vector<1x8x32xf32>,
    %576 = tpu.concatenate %549, %571 in 1 : vector<8x32xbf16>, vector<8x32xbf16> -> vector<8x64xbf16>
    %cst_203 = arith.constant dense<0.000000e+00> : vector<8x128xf32>
    %577 = tpu.matmul %576, %120, %cst_203 {dimension_numbers = #tpu.dot_dimension_numbers<[1], [0], [0], [1], [0, 0, 1, 1], [], []>} : vector<8x64xbf16>, vector<64x128xbf16>, vector<8x128xf32> -> vector<8x128xf32>
    %578 = vector.broadcast %121 : vector<1x128xf32> to vector<8x128xf32>
    %579 = arith.addf %577, %578 : vector<8x128xf32>
    %cst_204 = arith.constant 5.000000e-01 : f32
    %580 = vector.broadcast %cst_204 : f32 to vector<8x128xf32>
    %581 = arith.mulf %580, %579 : vector<8x128xf32>
    %582 = math.tanh %581 : vector<8x128xf32>
    %cst_205 = arith.constant 5.000000e-01 : f32
    %583 = vector.broadcast %cst_205 : f32 to vector<8x128xf32>
    %584 = arith.mulf %583, %582 : vector<8x128xf32>
    %cst_206 = arith.constant 5.000000e-01 : f32
    %585 = vector.broadcast %cst_206 : f32 to vector<8x128xf32>
    %586 = arith.addf %584, %585 : vector<8x128xf32>
    %587 = math.tanh %579 : vector<8x128xf32>
    %588 = vector.extract_strided_slice %586 {offsets = [0, 0], sizes = [8, 32], strides = [1, 1]} : vector<8x128xf32> to vector<8x32xf32>
    %589 = vector.extract_strided_slice %586 {offsets = [0, 32], sizes = [8, 32], strides = [1, 1]} : vector<8x128xf32> to vector<8x32xf32>
    %590 = vector.extract_strided_slice %587 {offsets = [0, 64], sizes = [8, 32], strides = [1, 1]} : vector<8x128xf32> to vector<8x32xf32>
    %591 = vector.extract_strided_slice %586 {offsets = [0, 96], sizes = [8, 32], strides = [1, 1]} : vector<8x128xf32> to vector<8x32xf32>
    %592 = arith.mulf %589, %568 : vector<8x32xf32>
    %593 = arith.mulf %588, %590 : vector<8x32xf32>
    %594 = arith.addf %592, %593 : vector<8x32xf32>
    %595 = math.tanh %594 : vector<8x32xf32>
    %596 = arith.mulf %591, %595 : vector<8x32xf32>
    %597 = arith.truncf %596 : vector<8x32xf32> to vector<8x32xbf16>
    %598 = arith.extf %597 : vector<8x32xbf16> to vector<8x32xf32>
    %c8_207 = arith.constant 8 : index
    %c0_208 = arith.constant 0 : index
    %c0_209 = arith.constant 0 : index
    %599 = vector.load %arg15[%c8_207, %c0_208, %c0_209] : memref<9x8x32xf32, #tpu.memory_space<vmem>>, vector<1x8x32xf32>
    %600 = vector.shape_cast %599 : vector<1x8x32xf32> to vector<8x32xf32>
    %601 = vector.shape_cast %598 : vector<8x32xf32> to vector<1x8x32xf32>
    tpu.vector_store %arg15[%c8_207, %c0_208, %c0_209], %601 {strides = array<i32>} : memref<9x8x32xf32, #tpu.memory_space<vmem>>, vector<1x8x32xf32>,
    %c0_210 = arith.constant 0 : index
    %c0_211 = arith.constant 0 : index
    %c0_212 = arith.constant 0 : index
    %602 = vector.load %arg15[%c0_210, %c0_211, %c0_212] : memref<9x8x32xf32, #tpu.memory_space<vmem>>, vector<9x8x32xf32>
    %603 = vector.shape_cast %602 : vector<9x8x32xf32> to vector<72x32xf32>
    %604 = arith.truncf %603 : vector<72x32xf32> to vector<72x32xbf16>
    %c0_213 = arith.constant 0 : index
    %c0_214 = arith.constant 0 : index
    %605 = vector.load %arg11[%c0_213, %c0_214] : memref<32x128xbf16, #tpu.memory_space<vmem>>, vector<32x128xbf16>
    %cst_215 = arith.constant dense<0.000000e+00> : vector<72x128xf32>
    %606 = tpu.matmul %604, %605, %cst_215 {dimension_numbers = #tpu.dot_dimension_numbers<[1], [0], [0], [1], [0, 0, 1, 1], [], []>} : vector<72x32xbf16>, vector<32x128xbf16>, vector<72x128xf32> -> vector<72x128xf32>
    %c0_216 = arith.constant 0 : index
    %c0_217 = arith.constant 0 : index
    %607 = vector.load %arg12[%c0_216, %c0_217] : memref<1x128xf32, #tpu.memory_space<vmem>>, vector<1x128xf32>
    %608 = vector.broadcast %607 : vector<1x128xf32> to vector<72x128xf32>
    %609 = arith.addf %606, %608 : vector<72x128xf32>
    %610 = vector.extract_strided_slice %609 {offsets = [0, 0], sizes = [8, 128], strides = [1, 1]} : vector<72x128xf32> to vector<8x128xf32>
    %c0_218 = arith.constant 0 : index
    %c0_219 = arith.constant 0 : index
    %c0_220 = arith.constant 0 : index
    %611 = vector.load %arg13[%c0_218, %c0_219, %c0_220] : memref<8x9x128xf32, #tpu.memory_space<vmem>>, vector<8x1x128xf32>
    %612 = vector.shape_cast %611 : vector<8x1x128xf32> to vector<8x128xf32>
    %613 = vector.shape_cast %610 : vector<8x128xf32> to vector<8x1x128xf32>
    tpu.vector_store %arg13[%c0_218, %c0_219, %c0_220], %613 {strides = array<i32>} : memref<8x9x128xf32, #tpu.memory_space<vmem>>, vector<8x1x128xf32>,
    %614 = vector.extract_strided_slice %609 {offsets = [8, 0], sizes = [8, 128], strides = [1, 1]} : vector<72x128xf32> to vector<8x128xf32>
    %c0_221 = arith.constant 0 : index
    %c1_222 = arith.constant 1 : index
    %c0_223 = arith.constant 0 : index
    %615 = vector.load %arg13[%c0_221, %c1_222, %c0_223] : memref<8x9x128xf32, #tpu.memory_space<vmem>>, vector<8x1x128xf32>
    %616 = vector.shape_cast %615 : vector<8x1x128xf32> to vector<8x128xf32>
    %617 = vector.shape_cast %614 : vector<8x128xf32> to vector<8x1x128xf32>
    tpu.vector_store %arg13[%c0_221, %c1_222, %c0_223], %617 {strides = array<i32>} : memref<8x9x128xf32, #tpu.memory_space<vmem>>, vector<8x1x128xf32>,
    %618 = vector.extract_strided_slice %609 {offsets = [16, 0], sizes = [8, 128], strides = [1, 1]} : vector<72x128xf32> to vector<8x128xf32>
    %c0_224 = arith.constant 0 : index
    %c2_225 = arith.constant 2 : index
    %c0_226 = arith.constant 0 : index
    %619 = vector.load %arg13[%c0_224, %c2_225, %c0_226] : memref<8x9x128xf32, #tpu.memory_space<vmem>>, vector<8x1x128xf32>
    %620 = vector.shape_cast %619 : vector<8x1x128xf32> to vector<8x128xf32>
    %621 = vector.shape_cast %618 : vector<8x128xf32> to vector<8x1x128xf32>
    tpu.vector_store %arg13[%c0_224, %c2_225, %c0_226], %621 {strides = array<i32>} : memref<8x9x128xf32, #tpu.memory_space<vmem>>, vector<8x1x128xf32>,
    %622 = vector.extract_strided_slice %609 {offsets = [24, 0], sizes = [8, 128], strides = [1, 1]} : vector<72x128xf32> to vector<8x128xf32>
    %c0_227 = arith.constant 0 : index
    %c3_228 = arith.constant 3 : index
    %c0_229 = arith.constant 0 : index
    %623 = vector.load %arg13[%c0_227, %c3_228, %c0_229] : memref<8x9x128xf32, #tpu.memory_space<vmem>>, vector<8x1x128xf32>
    %624 = vector.shape_cast %623 : vector<8x1x128xf32> to vector<8x128xf32>
    %625 = vector.shape_cast %622 : vector<8x128xf32> to vector<8x1x128xf32>
    tpu.vector_store %arg13[%c0_227, %c3_228, %c0_229], %625 {strides = array<i32>} : memref<8x9x128xf32, #tpu.memory_space<vmem>>, vector<8x1x128xf32>,
    %626 = vector.extract_strided_slice %609 {offsets = [32, 0], sizes = [8, 128], strides = [1, 1]} : vector<72x128xf32> to vector<8x128xf32>
    %c0_230 = arith.constant 0 : index
    %c4_231 = arith.constant 4 : index
    %c0_232 = arith.constant 0 : index
    %627 = vector.load %arg13[%c0_230, %c4_231, %c0_232] : memref<8x9x128xf32, #tpu.memory_space<vmem>>, vector<8x1x128xf32>
    %628 = vector.shape_cast %627 : vector<8x1x128xf32> to vector<8x128xf32>
    %629 = vector.shape_cast %626 : vector<8x128xf32> to vector<8x1x128xf32>
    tpu.vector_store %arg13[%c0_230, %c4_231, %c0_232], %629 {strides = array<i32>} : memref<8x9x128xf32, #tpu.memory_space<vmem>>, vector<8x1x128xf32>,
    %630 = vector.extract_strided_slice %609 {offsets = [40, 0], sizes = [8, 128], strides = [1, 1]} : vector<72x128xf32> to vector<8x128xf32>
    %c0_233 = arith.constant 0 : index
    %c5_234 = arith.constant 5 : index
    %c0_235 = arith.constant 0 : index
    %631 = vector.load %arg13[%c0_233, %c5_234, %c0_235] : memref<8x9x128xf32, #tpu.memory_space<vmem>>, vector<8x1x128xf32>
    %632 = vector.shape_cast %631 : vector<8x1x128xf32> to vector<8x128xf32>
    %633 = vector.shape_cast %630 : vector<8x128xf32> to vector<8x1x128xf32>
    tpu.vector_store %arg13[%c0_233, %c5_234, %c0_235], %633 {strides = array<i32>} : memref<8x9x128xf32, #tpu.memory_space<vmem>>, vector<8x1x128xf32>,
    %634 = vector.extract_strided_slice %609 {offsets = [48, 0], sizes = [8, 128], strides = [1, 1]} : vector<72x128xf32> to vector<8x128xf32>
    %c0_236 = arith.constant 0 : index
    %c6_237 = arith.constant 6 : index
    %c0_238 = arith.constant 0 : index
    %635 = vector.load %arg13[%c0_236, %c6_237, %c0_238] : memref<8x9x128xf32, #tpu.memory_space<vmem>>, vector<8x1x128xf32>
    %636 = vector.shape_cast %635 : vector<8x1x128xf32> to vector<8x128xf32>
    %637 = vector.shape_cast %634 : vector<8x128xf32> to vector<8x1x128xf32>
    tpu.vector_store %arg13[%c0_236, %c6_237, %c0_238], %637 {strides = array<i32>} : memref<8x9x128xf32, #tpu.memory_space<vmem>>, vector<8x1x128xf32>,
    %638 = vector.extract_strided_slice %609 {offsets = [56, 0], sizes = [8, 128], strides = [1, 1]} : vector<72x128xf32> to vector<8x128xf32>
    %c0_239 = arith.constant 0 : index
    %c7_240 = arith.constant 7 : index
    %c0_241 = arith.constant 0 : index
    %639 = vector.load %arg13[%c0_239, %c7_240, %c0_241] : memref<8x9x128xf32, #tpu.memory_space<vmem>>, vector<8x1x128xf32>
    %640 = vector.shape_cast %639 : vector<8x1x128xf32> to vector<8x128xf32>
    %641 = vector.shape_cast %638 : vector<8x128xf32> to vector<8x1x128xf32>
    tpu.vector_store %arg13[%c0_239, %c7_240, %c0_241], %641 {strides = array<i32>} : memref<8x9x128xf32, #tpu.memory_space<vmem>>, vector<8x1x128xf32>,
    %642 = vector.extract_strided_slice %609 {offsets = [64, 0], sizes = [8, 128], strides = [1, 1]} : vector<72x128xf32> to vector<8x128xf32>
    %c0_242 = arith.constant 0 : index
    %c8_243 = arith.constant 8 : index
    %c0_244 = arith.constant 0 : index
    %643 = vector.load %arg13[%c0_242, %c8_243, %c0_244] : memref<8x9x128xf32, #tpu.memory_space<vmem>>, vector<8x1x128xf32>
    %644 = vector.shape_cast %643 : vector<8x1x128xf32> to vector<8x128xf32>
    %645 = vector.shape_cast %642 : vector<8x128xf32> to vector<8x1x128xf32>
    tpu.vector_store %arg13[%c0_242, %c8_243, %c0_244], %645 {strides = array<i32>} : memref<8x9x128xf32, #tpu.memory_space<vmem>>, vector<8x1x128xf32>,
    return
  }
  func.func @transform_0(%arg0: i32) -> (i32, i32) {
    %c0_i32 = arith.constant 0 : i32
    %c0_i32_0 = arith.constant 0 : i32
    return %arg0, %c0_i32 : i32, i32
  }
  func.func @transform_1(%arg0: i32) -> (i32, i32) {
    %c0_i32 = arith.constant 0 : i32
    %c0_i32_0 = arith.constant 0 : i32
    return %arg0, %c0_i32 : i32, i32
  }
  func.func @transform_2(%arg0: i32) -> (i32, i32) {
    %c0_i32 = arith.constant 0 : i32
    %c0_i32_0 = arith.constant 0 : i32
    %c0_i32_1 = arith.constant 0 : i32
    return %c0_i32, %c0_i32_0 : i32, i32
  }
  func.func @transform_3(%arg0: i32) -> (i32, i32) {
    %c0_i32 = arith.constant 0 : i32
    %c0_i32_0 = arith.constant 0 : i32
    %c0_i32_1 = arith.constant 0 : i32
    return %c0_i32, %c0_i32_0 : i32, i32
  }
  func.func @transform_4(%arg0: i32) -> (i32, i32) {
    %c0_i32 = arith.constant 0 : i32
    %c0_i32_0 = arith.constant 0 : i32
    %c0_i32_1 = arith.constant 0 : i32
    return %c0_i32, %c0_i32_0 : i32, i32
  }
  func.func @transform_5(%arg0: i32) -> (i32, i32) {
    %c0_i32 = arith.constant 0 : i32
    %c0_i32_0 = arith.constant 0 : i32
    %c0_i32_1 = arith.constant 0 : i32
    return %c0_i32, %c0_i32_0 : i32, i32
  }
  func.func @transform_6(%arg0: i32) -> (i32, i32) {
    %c0_i32 = arith.constant 0 : i32
    %c0_i32_0 = arith.constant 0 : i32
    %c0_i32_1 = arith.constant 0 : i32
    return %c0_i32, %c0_i32_0 : i32, i32
  }
  func.func @transform_7(%arg0: i32) -> (i32, i32) {
    %c0_i32 = arith.constant 0 : i32
    %c0_i32_0 = arith.constant 0 : i32
    %c0_i32_1 = arith.constant 0 : i32
    return %c0_i32, %c0_i32_0 : i32, i32
  }
  func.func @transform_8(%arg0: i32) -> (i32, i32) {
    %c0_i32 = arith.constant 0 : i32
    %c0_i32_0 = arith.constant 0 : i32
    %c0_i32_1 = arith.constant 0 : i32
    return %c0_i32, %c0_i32_0 : i32, i32
  }
  func.func @transform_9(%arg0: i32) -> (i32, i32) {
    %c0_i32 = arith.constant 0 : i32
    %c0_i32_0 = arith.constant 0 : i32
    %c0_i32_1 = arith.constant 0 : i32
    return %c0_i32, %c0_i32_0 : i32, i32
  }
  func.func @transform_10(%arg0: i32) -> (i32, i32) {
    %c0_i32 = arith.constant 0 : i32
    %c0_i32_0 = arith.constant 0 : i32
    %c0_i32_1 = arith.constant 0 : i32
    return %c0_i32, %c0_i32_0 : i32, i32
  }
  func.func @transform_11(%arg0: i32) -> (i32, i32) {
    %c0_i32 = arith.constant 0 : i32
    %c0_i32_0 = arith.constant 0 : i32
    %c0_i32_1 = arith.constant 0 : i32
    return %c0_i32, %c0_i32_0 : i32, i32
  }
  func.func @transform_12(%arg0: i32) -> (i32, i32, i32) {
    %c0_i32 = arith.constant 0 : i32
    %c0_i32_0 = arith.constant 0 : i32
    %c0_i32_1 = arith.constant 0 : i32
    return %arg0, %c0_i32, %c0_i32_0 : i32, i32, i32
  }
}

</mosaic_0001>

<llo_original>
// kernel: language_model_forward.1
$region0: #{language_model_forward.1}
  #allocation0 [shape = 'u32[]', space=smem, size = 0x4, offset = 0x4, fixed_abs, tag = 'smem constant byte address 0x4 - core index']
  #allocation1 [shape = 'u32[72,128]{1,0:T(1,128)}', space=vmem, size = 0x9000, scoped, tag = 'internal scratch']
  #allocation2 [shape = 'f32[10,8,128]{2,1,0:T(8,128)}', space=vmem, size = 0xa000, scoped, tag = 'scratch operand']
  #allocation3 [shape = 'f32[9,8,32]{2,1,0:T(8,128)}', space=vmem, size = 0x9000, scoped, tag = 'scratch operand']
  %s0 = inlined_call_operand.vmem [shape: f32[8,64], index: 0, kind: input, shape index: {}]
  %s1 = inlined_call_operand.vmem [shape: s32[8,8], index: 1, kind: input, shape index: {}]
  %s2 = inlined_call_operand.vmem [shape: f32[64,32], index: 2, kind: input, shape index: {}]
  %s3 = inlined_call_operand.vmem [shape: f32[1,32], index: 3, kind: input, shape index: {}]
  %s4 = inlined_call_operand.vmem [shape: bf16[32,32], index: 4, kind: input, shape index: {}]
  %s5 = inlined_call_operand.vmem [shape: bf16[32,128], index: 5, kind: input, shape index: {}]
  %s6 = inlined_call_operand.vmem [shape: bf16[32,128], index: 6, kind: input, shape index: {}]
  %s7 = inlined_call_operand.vmem [shape: f32[1,128], index: 7, kind: input, shape index: {}]
  %s8 = inlined_call_operand.vmem [shape: bf16[64,128], index: 8, kind: input, shape index: {}]
  %s9 = inlined_call_operand.vmem [shape: f32[1,128], index: 9, kind: input, shape index: {}]
  %s10 = inlined_call_operand.vmem [shape: bf16[32,128], index: 10, kind: input, shape index: {}]
  %s11 = inlined_call_operand.vmem [shape: f32[1,128], index: 11, kind: input, shape index: {}]
  %s12 = inlined_call_operand.vmem [shape: f32[8,9,128], index: 12, kind: output, shape index: {}]
  %s13 = sld [smem:[#allocation0]]
  $region58: #{language_model_forward.1} parent=0
    _
  %s15 = ssub.s32 1, %s13
  %s16 = scalar_select 0, %s15, %s13
  // Predicated region
  $region2: #{language_model_forward.1} parent=0 // pred_check
    _
  $region3: #{language_model_forward.1} parent=0 // pred_check_branch
    %18 = sbr.rel (0) target = $region5
  $region4: #{language_model_forward.1} parent=0 // pred_region
    _
  $region5: #{language_model_forward.1} parent=0 // pred_fallthru
    _
  // Predicated region
  $region6: #{language_model_forward.1} parent=0 // pred_check
    _
  $region7: #{language_model_forward.1} parent=0 // pred_check_branch
    %20 = sbr.rel (0) target = $region9
  $region8: #{language_model_forward.1} parent=0 // pred_region
    _
  $region9: #{language_model_forward.1} parent=0 // pred_fallthru
    _
  // Predicated region
  $region10: #{language_model_forward.1} parent=0 // pred_check
    _
  $region11: #{language_model_forward.1} parent=0 // pred_check_branch
    %22 = sbr.rel (0) target = $region13
  $region12: #{language_model_forward.1} parent=0 // pred_region
    _
  $region13: #{language_model_forward.1} parent=0 // pred_fallthru
    _
  // Predicated region
  $region14: #{language_model_forward.1} parent=0 // pred_check
    _
  $region15: #{language_model_forward.1} parent=0 // pred_check_branch
    %24 = sbr.rel (0) target = $region17
  $region16: #{language_model_forward.1} parent=0 // pred_region
    _
  $region17: #{language_model_forward.1} parent=0 // pred_fallthru
    _
  // Predicated region
  $region18: #{language_model_forward.1} parent=0 // pred_check
    _
  $region19: #{language_model_forward.1} parent=0 // pred_check_branch
    %26 = sbr.rel (0) target = $region21
  $region20: #{language_model_forward.1} parent=0 // pred_region
    _
  $region21: #{language_model_forward.1} parent=0 // pred_fallthru
    _
  // Predicated region
  $region22: #{language_model_forward.1} parent=0 // pred_check
    _
  $region23: #{language_model_forward.1} parent=0 // pred_check_branch
    %28 = sbr.rel (0) target = $region25
  $region24: #{language_model_forward.1} parent=0 // pred_region
    _
  $region25: #{language_model_forward.1} parent=0 // pred_fallthru
    _
  // Predicated region
  $region26: #{language_model_forward.1} parent=0 // pred_check
    _
  $region27: #{language_model_forward.1} parent=0 // pred_check_branch
    %30 = sbr.rel (0) target = $region29
  $region28: #{language_model_forward.1} parent=0 // pred_region
    _
  $region29: #{language_model_forward.1} parent=0 // pred_fallthru
    _
  // Predicated region
  $region30: #{language_model_forward.1} parent=0 // pred_check
    _
  $region31: #{language_model_forward.1} parent=0 // pred_check_branch
    %32 = sbr.rel (0) target = $region33
  $region32: #{language_model_forward.1} parent=0 // pred_region
    _
  $region33: #{language_model_forward.1} parent=0 // pred_fallthru
    _
  // Predicated region
  $region34: #{language_model_forward.1} parent=0 // pred_check
    _
  $region35: #{language_model_forward.1} parent=0 // pred_check_branch
    %34 = sbr.rel (0) target = $region37
  $region36: #{language_model_forward.1} parent=0 // pred_region
    _
  $region37: #{language_model_forward.1} parent=0 // pred_fallthru
    _
  // Predicated region
  $region38: #{language_model_forward.1} parent=0 // pred_check
    _
  $region39: #{language_model_forward.1} parent=0 // pred_check_branch
    %36 = sbr.rel (0) target = $region41
  $region40: #{language_model_forward.1} parent=0 // pred_region
    _
  $region41: #{language_model_forward.1} parent=0 // pred_fallthru
    _
  // Predicated region
  $region42: #{language_model_forward.1} parent=0 // pred_check
    _
  $region43: #{language_model_forward.1} parent=0 // pred_check_branch
    %38 = sbr.rel (0) target = $region45
  $region44: #{language_model_forward.1} parent=0 // pred_region
    _
  $region45: #{language_model_forward.1} parent=0 // pred_fallthru
    _
  // Predicated region
  $region46: #{language_model_forward.1} parent=0 // pred_check
    _
  $region47: #{language_model_forward.1} parent=0 // pred_check_branch
    %40 = sbr.rel (0) target = $region49
  $region48: #{language_model_forward.1} parent=0 // pred_region
    _
  $region49: #{language_model_forward.1} parent=0 // pred_fallthru
    _
  %v42 = vld [vmem:[%s7] sm:$0x1]
  %v43 = vld [vmem:[%s0] sm:$0xff]
  %v44 = vld [vmem:[%s2] sm:$0xff]
  %v45 = vld [vmem:[%s2 + $0x8] sm:$0xff]
  %v46 = vld [vmem:[%s2 + $0x10] sm:$0xff]
  %v47 = vld [vmem:[%s2 + $0x18] sm:$0xff]
  %v48 = vld [vmem:[%s2 + $0x20] sm:$0xff]
  %v49 = vld [vmem:[%s2 + $0x28] sm:$0xff]
  %v50 = vld [vmem:[%s2 + $0x30] sm:$0xff]
  %v51 = vld [vmem:[%s2 + $0x38] sm:$0xff]
  %v52 = vld [vmem:[%s3] sm:$0x1]
  %v54 = vperm.slane %v52, 0
  %vm56 = vcmask 523264
  %v58 = vsel %vm56, %v43, 0
  %60 = vmatpush.msra.mxu0 0.0
  %61 = vmatpush.msra.mxu0 0.0
  %62 = vmatpush.msra.mxu0 0.0
  %63 = vmatpush.msra.mxu0 0.0
  %64 = vmatpush.msra.mxu0 0.0
  %65 = vmatpush.msra.mxu0 0.0
  %66 = vmatpush.msra.mxu0 0.0
  %67 = vmatpush.msra.mxu0 0.0
  %68 = vmatpush.msra.mxu0 %v51
  %69 = vmatpush.msra.mxu0 %v50
  %70 = vmatpush.msra.mxu0 %v49
  %71 = vmatpush.msra.mxu0 %v48
  %72 = vmatpush.msra.mxu0 %v47
  %73 = vmatpush.msra.mxu0 %v46
  %74 = vmatpush.msra.mxu0 %v45
  %75 = vmatpush.msra.mxu0 %v44
  %76 = vmatmul.f32.gmra.mxu0 %v58
  %v77 = vpop.f32.mrf.mxu0
  %v78 = vadd.f32 %v54, %v77
  %79 = vdwg.mxu0
  %v80 = vmax.f32 %v78, 0.0
  %v81 = vpack.c.bf16 %v80, %v80
  %v82 = vld [vmem:[%s5] sm:$0xf]
  %v83 = vld [vmem:[%s5 + $0x4] sm:$0xf]
  %v84 = vld [vmem:[%s5 + $0x8] sm:$0xf]
  %v85 = vld [vmem:[%s5 + $0xc] sm:$0xf]
  %v87 = vperm.slane %v42, 0
  %v93 = vunpack.c.l.b16 %v82
  %v94 = vunpack.c.l.b16 %v83
  %v95 = vunpack.c.l.b16 %v84
  %v96 = vunpack.c.l.b16 %v85
  %v97 = vpack.c.b16 %v94, %v93
  %v98 = vpack.c.b16 %v96, %v95
  %vm101 = vcmask 261120
  %v103 = vsel %vm101, %v81, 0
  %105 = vmatpush.bf16.msra.mxu0 0
  %106 = vmatpush.bf16.msra.mxu0 0
  %107 = vmatpush.bf16.msra.mxu0 0
  %108 = vmatpush.bf16.msra.mxu0 0
  %109 = vmatpush.bf16.msra.mxu0 0
  %110 = vmatpush.bf16.msra.mxu0 0
  %111 = vmatpush.bf16.msra.mxu0 %v98
  %112 = vmatpush.bf16.msra.mxu0 %v97
  %113 = vmatmul.bf16.gmra.mxu0 %v103
  %v114 = vpop.f32.mrf.mxu0
  %v115 = vadd.f32 %v87, %v114
  %v116 = vpop.f32.mrf.mxu0
  %117 = vdwg.mxu0
  %118 = vst [vmem:[#allocation2] sm:$0xff] %v115
  %v119 = vld [vmem:[%s4] sm:$0xf]
  %v120 = vld [vmem:[%s4 + $0x4] sm:$0xf]
  %v121 = vld [vmem:[%s4 + $0x8] sm:$0xf]
  %v122 = vld [vmem:[%s4 + $0xc] sm:$0xf]
  %v123 = vld [vmem:[%s5] sm:$0xf]
  %v124 = vld [vmem:[%s5 + $0x4] sm:$0xf]
  %v125 = vld [vmem:[%s5 + $0x8] sm:$0xf]
  %v126 = vld [vmem:[%s5 + $0xc] sm:$0xf]
  %v131 = vunpack.c.l.b16 %v119
  %v132 = vunpack.c.l.b16 %v120
  %v133 = vunpack.c.l.b16 %v121
  %v134 = vunpack.c.l.b16 %v122
  %v135 = vpack.c.b16 %v132, %v131
  %v136 = vpack.c.b16 %v134, %v133
  %v141 = vunpack.c.l.b16 %v123
  %v142 = vunpack.c.l.b16 %v124
  %v143 = vunpack.c.l.b16 %v125
  %v144 = vunpack.c.l.b16 %v126
  %v145 = vpack.c.b16 %v142, %v141
  %v146 = vpack.c.b16 %v144, %v143
  %v150 = vsel %vm101, %v135, 0
  %v153 = vsel %vm101, %v136, 0
  %155 = vmatpush.bf16.msra.mxu0 0
  %156 = vmatpush.bf16.msra.mxu0 0
  %157 = vmatpush.bf16.msra.mxu0 0
  %158 = vmatpush.bf16.msra.mxu0 0
  %159 = vmatpush.bf16.msra.mxu0 0
  %160 = vmatpush.bf16.msra.mxu0 0
  %161 = vmatpush.bf16.msra.mxu0 %v146
  %162 = vmatpush.bf16.msra.mxu0 %v145
  %163 = vmatmul.bf16.gmra.mxu0 %v150
  %v164 = vpop.f32.mrf.mxu0
  %v165 = vadd.f32 %v87, %v164
  %v166 = vpop.f32.mrf.mxu0
  %v167 = vadd.f32 %v87, %v166
  %168 = vmatmul.bf16.gmra.mxu0 %v153
  %v169 = vpop.f32.mrf.mxu0
  %v170 = vadd.f32 %v87, %v169
  %v171 = vpop.f32.mrf.mxu0
  %v172 = vadd.f32 %v87, %v171
  %173 = vdwg.mxu0
  %v174 = vperm.slane %v170, 1
  %s175 = scalar_lea.vmem [#allocation2], 8
  %176 = vst [vmem:[%s175] sm:$0xff] %v174
  %v177 = vpack.c.bf16 %v167, %v165
  %v178 = vpack.c.bf16 %v172, %v170
  %v179 = vld [vmem:[%s1] sm:$0xff]
  %v180 = vlaneseq
  %v181 = vand.u32 %v180, 127
  %182 = vset.pattern.permute.xlu0 0
  %183 = vperm.xlu0 %182, %v179
  %v184 = vpop.permute.xlu0 %183
  %vm185 = vcmp.eq.s32.totalorder %v184, %v181
  %v186 = vsel %vm185, 1.0, 0.0
  %v187 = vpack.c.bf16 %v186, %v186
  %v189 = vsel %vm101, %v187, 0
  %191 = vmatpush.bf16.msra.mxu0 0
  %192 = vmatpush.bf16.msra.mxu0 0
  %193 = vmatpush.bf16.msra.mxu0 0
  %194 = vmatpush.bf16.msra.mxu0 0
  %195 = vmatpush.bf16.msra.mxu0 0
  %196 = vmatpush.bf16.msra.mxu0 0
  %197 = vmatpush.bf16.msra.mxu0 %v178
  %198 = vmatpush.bf16.msra.mxu0 %v177
  %199 = vmatmul.bf16.gmra.mxu0 %v189
  %v200 = vpop.f32.mrf.mxu0
  %v201 = vadd.f32 0.0, %v200
  %v202 = vpop.f32.mrf.mxu0
  %203 = vdwg.mxu0
  %s204 = scalar_lea.vmem [#allocation2], 16
  %205 = vst [vmem:[%s204] sm:$0xff] %v201
  %206 = vset.pattern.permute.xlu0 1
  %207 = vperm.xlu0 %206, %v179
  %v208 = vpop.permute.xlu0 %207
  %vm209 = vcmp.eq.s32.totalorder %v208, %v181
  %v210 = vsel %vm209, 1.0, 0.0
  %v211 = vpack.c.bf16 %v210, %v210
  %v213 = vsel %vm101, %v211, 0
  %215 = vmatpush.bf16.msra.mxu0 0
  %216 = vmatpush.bf16.msra.mxu0 0
  %217 = vmatpush.bf16.msra.mxu0 0
  %218 = vmatpush.bf16.msra.mxu0 0
  %219 = vmatpush.bf16.msra.mxu0 0
  %220 = vmatpush.bf16.msra.mxu0 0
  %221 = vmatpush.bf16.msra.mxu0 %v178
  %222 = vmatpush.bf16.msra.mxu0 %v177
  %223 = vmatmul.bf16.gmra.mxu0 %v213
  %v224 = vpop.f32.mrf.mxu0
  %v225 = vadd.f32 0.0, %v224
  %v226 = vpop.f32.mrf.mxu0
  %227 = vdwg.mxu0
  %s228 = scalar_lea.vmem [#allocation2], 24
  %229 = vst [vmem:[%s228] sm:$0xff] %v225
  %230 = vset.pattern.permute.xlu0 2
  %231 = vperm.xlu0 %230, %v179
  %v232 = vpop.permute.xlu0 %231
  %vm233 = vcmp.eq.s32.totalorder %v232, %v181
  %v234 = vsel %vm233, 1.0, 0.0
  %v235 = vpack.c.bf16 %v234, %v234
  %v237 = vsel %vm101, %v235, 0
  %239 = vmatpush.bf16.msra.mxu0 0
  %240 = vmatpush.bf16.msra.mxu0 0
  %241 = vmatpush.bf16.msra.mxu0 0
  %242 = vmatpush.bf16.msra.mxu0 0
  %243 = vmatpush.bf16.msra.mxu0 0
  %244 = vmatpush.bf16.msra.mxu0 0
  %245 = vmatpush.bf16.msra.mxu0 %v178
  %246 = vmatpush.bf16.msra.mxu0 %v177
  %247 = vmatmul.bf16.gmra.mxu0 %v237
  %v248 = vpop.f32.mrf.mxu0
  %v249 = vadd.f32 0.0, %v248
  %v250 = vpop.f32.mrf.mxu0
  %251 = vdwg.mxu0
  %s252 = scalar_lea.vmem [#allocation2], 32
  %253 = vst [vmem:[%s252] sm:$0xff] %v249
  %254 = vset.pattern.permute.xlu0 3
  %255 = vperm.xlu0 %254, %v179
  %v256 = vpop.permute.xlu0 %255
  %vm257 = vcmp.eq.s32.totalorder %v256, %v181
  %v258 = vsel %vm257, 1.0, 0.0
  %v259 = vpack.c.bf16 %v258, %v258
  %v261 = vsel %vm101, %v259, 0
  %263 = vmatpush.bf16.msra.mxu0 0
  %264 = vmatpush.bf16.msra.mxu0 0
  %265 = vmatpush.bf16.msra.mxu0 0
  %266 = vmatpush.bf16.msra.mxu0 0
  %267 = vmatpush.bf16.msra.mxu0 0
  %268 = vmatpush.bf16.msra.mxu0 0
  %269 = vmatpush.bf16.msra.mxu0 %v178
  %270 = vmatpush.bf16.msra.mxu0 %v177
  %271 = vmatmul.bf16.gmra.mxu0 %v261
  %v272 = vpop.f32.mrf.mxu0
  %v273 = vadd.f32 0.0, %v272
  %v274 = vpop.f32.mrf.mxu0
  %275 = vdwg.mxu0
  %s276 = scalar_lea.vmem [#allocation2], 40
  %277 = vst [vmem:[%s276] sm:$0xff] %v273
  %278 = vset.pattern.permute.xlu0 4
  %279 = vperm.xlu0 %278, %v179
  %v280 = vpop.permute.xlu0 %279
  %vm281 = vcmp.eq.s32.totalorder %v280, %v181
  %v282 = vsel %vm281, 1.0, 0.0
  %v283 = vpack.c.bf16 %v282, %v282
  %v285 = vsel %vm101, %v283, 0
  %287 = vmatpush.bf16.msra.mxu0 0
  %288 = vmatpush.bf16.msra.mxu0 0
  %289 = vmatpush.bf16.msra.mxu0 0
  %290 = vmatpush.bf16.msra.mxu0 0
  %291 = vmatpush.bf16.msra.mxu0 0
  %292 = vmatpush.bf16.msra.mxu0 0
  %293 = vmatpush.bf16.msra.mxu0 %v178
  %294 = vmatpush.bf16.msra.mxu0 %v177
  %295 = vmatmul.bf16.gmra.mxu0 %v285
  %v296 = vpop.f32.mrf.mxu0
  %v297 = vadd.f32 0.0, %v296
  %v298 = vpop.f32.mrf.mxu0
  %299 = vdwg.mxu0
  %s300 = scalar_lea.vmem [#allocation2], 48
  %301 = vst [vmem:[%s300] sm:$0xff] %v297
  %302 = vset.pattern.permute.xlu0 5
  %303 = vperm.xlu0 %302, %v179
  %v304 = vpop.permute.xlu0 %303
  %vm305 = vcmp.eq.s32.totalorder %v304, %v181
  %v306 = vsel %vm305, 1.0, 0.0
  %v307 = vpack.c.bf16 %v306, %v306
  %v309 = vsel %vm101, %v307, 0
  %311 = vmatpush.bf16.msra.mxu0 0
  %312 = vmatpush.bf16.msra.mxu0 0
  %313 = vmatpush.bf16.msra.mxu0 0
  %314 = vmatpush.bf16.msra.mxu0 0
  %315 = vmatpush.bf16.msra.mxu0 0
  %316 = vmatpush.bf16.msra.mxu0 0
  %317 = vmatpush.bf16.msra.mxu0 %v178
  %318 = vmatpush.bf16.msra.mxu0 %v177
  %319 = vmatmul.bf16.gmra.mxu0 %v309
  %v320 = vpop.f32.mrf.mxu0
  %v321 = vadd.f32 0.0, %v320
  %v322 = vpop.f32.mrf.mxu0
  %323 = vdwg.mxu0
  %s324 = scalar_lea.vmem [#allocation2], 56
  %325 = vst [vmem:[%s324] sm:$0xff] %v321
  %326 = vset.pattern.permute.xlu0 6
  %327 = vperm.xlu0 %326, %v179
  %v328 = vpop.permute.xlu0 %327
  %vm329 = vcmp.eq.s32.totalorder %v328, %v181
  %v330 = vsel %vm329, 1.0, 0.0
  %v331 = vpack.c.bf16 %v330, %v330
  %v333 = vsel %vm101, %v331, 0
  %335 = vmatpush.bf16.msra.mxu0 0
  %336 = vmatpush.bf16.msra.mxu0 0
  %337 = vmatpush.bf16.msra.mxu0 0
  %338 = vmatpush.bf16.msra.mxu0 0
  %339 = vmatpush.bf16.msra.mxu0 0
  %340 = vmatpush.bf16.msra.mxu0 0
  %341 = vmatpush.bf16.msra.mxu0 %v178
  %342 = vmatpush.bf16.msra.mxu0 %v177
  %343 = vmatmul.bf16.gmra.mxu0 %v333
  %v344 = vpop.f32.mrf.mxu0
  %v345 = vadd.f32 0.0, %v344
  %v346 = vpop.f32.mrf.mxu0
  %347 = vdwg.mxu0
  %s348 = scalar_lea.vmem [#allocation2], 64
  %349 = vst [vmem:[%s348] sm:$0xff] %v345
  %350 = vset.pattern.permute.xlu0 7
  %351 = vperm.xlu0 %350, %v179
  %v352 = vpop.permute.xlu0 %351
  %vm353 = vcmp.eq.s32.totalorder %v352, %v181
  %v354 = vsel %vm353, 1.0, 0.0
  %v355 = vpack.c.bf16 %v354, %v354
  %v357 = vsel %vm101, %v355, 0
  %359 = vmatpush.bf16.msra.mxu0 0
  %360 = vmatpush.bf16.msra.mxu0 0
  %361 = vmatpush.bf16.msra.mxu0 0
  %362 = vmatpush.bf16.msra.mxu0 0
  %363 = vmatpush.bf16.msra.mxu0 0
  %364 = vmatpush.bf16.msra.mxu0 0
  %365 = vmatpush.bf16.msra.mxu0 %v178
  %366 = vmatpush.bf16.msra.mxu0 %v177
  %367 = vmatmul.bf16.gmra.mxu0 %v357
  %v368 = vpop.f32.mrf.mxu0
  %v369 = vadd.f32 0.0, %v368
  %v370 = vpop.f32.mrf.mxu0
  %371 = vdwg.mxu0
  %s372 = scalar_lea.vmem [#allocation2], 72
  %373 = vst [vmem:[%s372] sm:$0xff] %v369
  %v374 = vld [vmem:[%s6] sm:$0xf]
  %v375 = vld [vmem:[%s6 + $0x4] sm:$0xf]
  %v376 = vld [vmem:[%s6 + $0x8] sm:$0xf]
  %v377 = vld [vmem:[%s6 + $0xc] sm:$0xf]
  %v378 = vld [vmem:[%s8] sm:$0xf]
  %v379 = vld [vmem:[%s8 + $0x4] sm:$0xf]
  %v380 = vld [vmem:[%s8 + $0x8] sm:$0xf]
  %v381 = vld [vmem:[%s8 + $0xc] sm:$0xf]
  %v382 = vld [vmem:[%s8 + $0x10] sm:$0xf]
  %v383 = vld [vmem:[%s8 + $0x14] sm:$0xf]
  %v384 = vld [vmem:[%s8 + $0x18] sm:$0xf]
  %v385 = vld [vmem:[%s8 + $0x1c] sm:$0xf]
  %v386 = vld [vmem:[%s9] sm:$0x1]
  %v387 = vld [vmem:[#allocation2] sm:$0xff]
  %v392 = vunpack.c.l.b16 %v374
  %v393 = vunpack.c.l.b16 %v375
  %v394 = vunpack.c.l.b16 %v376
  %v395 = vunpack.c.l.b16 %v377
  %v396 = vpack.c.b16 %v393, %v392
  %v397 = vpack.c.b16 %v395, %v394
  %v401 = vsel %vm101, 0, 0
  %403 = vmatpush.bf16.msra.mxu0 0
  %404 = vmatpush.bf16.msra.mxu0 0
  %405 = vmatpush.bf16.msra.mxu0 0
  %406 = vmatpush.bf16.msra.mxu0 0
  %407 = vmatpush.bf16.msra.mxu0 0
  %408 = vmatpush.bf16.msra.mxu0 0
  %409 = vmatpush.bf16.msra.mxu0 %v397
  %410 = vmatpush.bf16.msra.mxu0 %v396
  %411 = vmatmul.bf16.gmra.mxu0 %v401
  %v412 = vpop.f32.mrf.mxu0
  %v413 = vadd.f32 0.0, %v412
  %v414 = vpop.f32.mrf.mxu0
  %415 = vdwg.mxu0
  %v416 = vadd.f32 %v387, %v413
  %v417 = vmul.f32 %v416, 0.5
  %v418 = vtanh.pop %v417
  %v419 = vmul.f32 %v418, 0.5
  %v420 = vadd.f32 %v419, 0.5
  %v421 = vtanh.pop %v416
  %v422 = vmul.f32 %v420, 0.0
  %424 = vrot.lane.b32.xlu0 %v421, 64
  %v425 = vpop.permute.xlu0 %424
  %v427 = vmul.f32 %v420, %v425
  %429 = vrot.lane.b32.xlu0 %v427, 32
  %v430 = vpop.permute.xlu0 %429
  %v432 = vadd.f32 %v422, %v430
  %v433 = vtanh.pop %v432
  %435 = vrot.lane.b32.xlu0 %v433, 64
  %v436 = vpop.permute.xlu0 %435
  %v438 = vmul.f32 %v420, %v436
  %v439 = vpack.c.bf16 %v438, %v438
  %v440 = vld [vmem:[%s175] sm:$0xff]
  %v442 = vunpack.c.l.b16 %v439
  %v443 = vpack.c.b16 %v442, %v442
  %444 = vrot.lane.b32.xlu0 %v443, 32
  %v445 = vpop.permute.xlu0 %444
  %v447 = vsel %vm101, %v445, 0
  %449 = vmatpush.bf16.msra.mxu0 0
  %450 = vmatpush.bf16.msra.mxu0 0
  %451 = vmatpush.bf16.msra.mxu0 0
  %452 = vmatpush.bf16.msra.mxu0 0
  %453 = vmatpush.bf16.msra.mxu0 0
  %454 = vmatpush.bf16.msra.mxu0 0
  %455 = vmatpush.bf16.msra.mxu0 %v397
  %456 = vmatpush.bf16.msra.mxu0 %v396
  %457 = vmatmul.bf16.gmra.mxu0 %v447
  %v458 = vpop.f32.mrf.mxu0
  %v459 = vadd.f32 0.0, %v458
  %v460 = vpop.f32.mrf.mxu0
  %461 = vdwg.mxu0
  %v462 = vadd.f32 %v440, %v459
  %v463 = vmul.f32 %v462, 0.5
  %v464 = vtanh.pop %v463
  %v465 = vmul.f32 %v464, 0.5
  %v466 = vadd.f32 %v465, 0.5
  %v467 = vtanh.pop %v462
  %v468 = vmul.f32 %v466, %v432
  %470 = vrot.lane.b32.xlu0 %v467, 64
  %v471 = vpop.permute.xlu0 %470
  %v473 = vmul.f32 %v466, %v471
  %475 = vrot.lane.b32.xlu0 %v473, 32
  %v476 = vpop.permute.xlu0 %475
  %v478 = vadd.f32 %v468, %v476
  %v479 = vtanh.pop %v478
  %481 = vrot.lane.b32.xlu0 %v479, 64
  %v482 = vpop.permute.xlu0 %481
  %v484 = vmul.f32 %v466, %v482
  %v485 = vpack.c.bf16 %v484, %v484
  %v486 = vsel %vm101, %v445, 0
  %v488 = vperm.slane %v386, 0
  %v498 = vunpack.c.l.b16 %v378
  %v499 = vunpack.c.l.b16 %v379
  %v500 = vunpack.c.l.b16 %v380
  %v501 = vunpack.c.l.b16 %v381
  %v502 = vunpack.c.l.b16 %v382
  %v503 = vunpack.c.l.b16 %v383
  %v504 = vunpack.c.l.b16 %v384
  %v505 = vunpack.c.l.b16 %v385
  %v506 = vpack.c.b16 %v499, %v498
  %v507 = vpack.c.b16 %v501, %v500
  %v508 = vpack.c.b16 %v503, %v502
  %v509 = vpack.c.b16 %v505, %v504
  %v514 = vsel %vm56, %v486, 0
  %516 = vmatpush.bf16.msra.mxu0 0
  %517 = vmatpush.bf16.msra.mxu0 0
  %518 = vmatpush.bf16.msra.mxu0 0
  %519 = vmatpush.bf16.msra.mxu0 0
  %520 = vmatpush.bf16.msra.mxu0 %v509
  %521 = vmatpush.bf16.msra.mxu0 %v508
  %522 = vmatpush.bf16.msra.mxu0 %v507
  %523 = vmatpush.bf16.msra.mxu0 %v506
  %524 = vmatmul.bf16.gmra.mxu0 %v514
  %v525 = vpop.f32.mrf.mxu0
  %v526 = vadd.f32 %v488, %v525
  %v527 = vpop.f32.mrf.mxu0
  %528 = vdwg.mxu0
  %v529 = vmul.f32 %v526, 0.5
  %v530 = vtanh.pop %v529
  %v531 = vmul.f32 %v530, 0.5
  %v532 = vadd.f32 %v531, 0.5
  %v533 = vtanh.pop %v526
  %v534 = vmul.f32 %v532, 0.0
  %536 = vrot.lane.b32.xlu0 %v533, 64
  %v537 = vpop.permute.xlu0 %536
  %v539 = vmul.f32 %v532, %v537
  %541 = vrot.lane.b32.xlu0 %v539, 32
  %v542 = vpop.permute.xlu0 %541
  %v544 = vadd.f32 %v534, %v542
  %v545 = vtanh.pop %v544
  %547 = vrot.lane.b32.xlu0 %v545, 64
  %v548 = vpop.permute.xlu0 %547
  %v550 = vmul.f32 %v532, %v548
  %v551 = vpack.c.bf16 %v550, %v550
  %v552 = vld [vmem:[%s204] sm:$0xff]
  %v554 = vunpack.c.l.b16 %v485
  %v555 = vpack.c.b16 %v554, %v554
  %556 = vrot.lane.b32.xlu0 %v555, 32
  %v557 = vpop.permute.xlu0 %556
  %v559 = vsel %vm101, %v557, 0
  %561 = vmatpush.bf16.msra.mxu0 0
  %562 = vmatpush.bf16.msra.mxu0 0
  %563 = vmatpush.bf16.msra.mxu0 0
  %564 = vmatpush.bf16.msra.mxu0 0
  %565 = vmatpush.bf16.msra.mxu0 0
  %566 = vmatpush.bf16.msra.mxu0 0
  %567 = vmatpush.bf16.msra.mxu0 %v397
  %568 = vmatpush.bf16.msra.mxu0 %v396
  %569 = vmatmul.bf16.gmra.mxu0 %v559
  %v570 = vpop.f32.mrf.mxu0
  %v571 = vadd.f32 0.0, %v570
  %v572 = vpop.f32.mrf.mxu0
  %573 = vdwg.mxu0
  %v574 = vadd.f32 %v552, %v571
  %v575 = vmul.f32 %v574, 0.5
  %v576 = vtanh.pop %v575
  %v577 = vmul.f32 %v576, 0.5
  %v578 = vadd.f32 %v577, 0.5
  %v579 = vtanh.pop %v574
  %v580 = vmul.f32 %v578, %v478
  %582 = vrot.lane.b32.xlu0 %v579, 64
  %v583 = vpop.permute.xlu0 %582
  %v585 = vmul.f32 %v578, %v583
  %587 = vrot.lane.b32.xlu0 %v585, 32
  %v588 = vpop.permute.xlu0 %587
  %v590 = vadd.f32 %v580, %v588
  %v591 = vtanh.pop %v590
  %593 = vrot.lane.b32.xlu0 %v591, 64
  %v594 = vpop.permute.xlu0 %593
  %v596 = vmul.f32 %v578, %v594
  %v597 = vpack.c.bf16 %v596, %v596
  %v599 = vunpack.c.l.b16 %v551
  %v600 = vpack.c.b16 %v599, %v599
  %601 = vrot.lane.b32.xlu0 %v600, 64
  %v602 = vpop.permute.xlu0 %601
  %v604 = vsel %vm101, %v557, %v602
  %v605 = vsel %vm56, %v604, 0
  %607 = vmatpush.bf16.msra.mxu0 0
  %608 = vmatpush.bf16.msra.mxu0 0
  %609 = vmatpush.bf16.msra.mxu0 0
  %610 = vmatpush.bf16.msra.mxu0 0
  %611 = vmatpush.bf16.msra.mxu0 %v509
  %612 = vmatpush.bf16.msra.mxu0 %v508
  %613 = vmatpush.bf16.msra.mxu0 %v507
  %614 = vmatpush.bf16.msra.mxu0 %v506
  %615 = vmatmul.bf16.gmra.mxu0 %v605
  %v616 = vpop.f32.mrf.mxu0
  %v617 = vadd.f32 %v488, %v616
  %v618 = vpop.f32.mrf.mxu0
  %619 = vdwg.mxu0
  %v620 = vmul.f32 %v617, 0.5
  %v621 = vtanh.pop %v620
  %v622 = vmul.f32 %v621, 0.5
  %v623 = vadd.f32 %v622, 0.5
  %v624 = vtanh.pop %v617
  %v625 = vmul.f32 %v623, %v544
  %627 = vrot.lane.b32.xlu0 %v624, 64
  %v628 = vpop.permute.xlu0 %627
  %v630 = vmul.f32 %v623, %v628
  %632 = vrot.lane.b32.xlu0 %v630, 32
  %v633 = vpop.permute.xlu0 %632
  %v635 = vadd.f32 %v625, %v633
  %v636 = vtanh.pop %v635
  %638 = vrot.lane.b32.xlu0 %v636, 64
  %v639 = vpop.permute.xlu0 %638
  %v641 = vmul.f32 %v623, %v639
  %v642 = vpack.c.bf16 %v641, %v641
  %v643 = vunpack.c.l.bf16 %v642
  %645 = vrot.lane.b32.xlu0 %v643, 32
  %v646 = vpop.permute.xlu0 %645
  %648 = vst.msk [vmem:[#allocation3] sm:$0xff] %vm101, %v646
  %v649 = vld [vmem:[%s228] sm:$0xff]
  %v651 = vunpack.c.l.b16 %v597
  %v652 = vpack.c.b16 %v651, %v651
  %653 = vrot.lane.b32.xlu0 %v652, 32
  %v654 = vpop.permute.xlu0 %653
  %v656 = vsel %vm101, %v654, 0
  %658 = vmatpush.bf16.msra.mxu0 0
  %659 = vmatpush.bf16.msra.mxu0 0
  %660 = vmatpush.bf16.msra.mxu0 0
  %661 = vmatpush.bf16.msra.mxu0 0
  %662 = vmatpush.bf16.msra.mxu0 0
  %663 = vmatpush.bf16.msra.mxu0 0
  %664 = vmatpush.bf16.msra.mxu0 %v397
  %665 = vmatpush.bf16.msra.mxu0 %v396
  %666 = vmatmul.bf16.gmra.mxu0 %v656
  %v667 = vpop.f32.mrf.mxu0
  %v668 = vadd.f32 0.0, %v667
  %v669 = vpop.f32.mrf.mxu0
  %670 = vdwg.mxu0
  %v671 = vadd.f32 %v649, %v668
  %v672 = vmul.f32 %v671, 0.5
  %v673 = vtanh.pop %v672
  %v674 = vmul.f32 %v673, 0.5
  %v675 = vadd.f32 %v674, 0.5
  %v676 = vtanh.pop %v671
  %v677 = vmul.f32 %v675, %v590
  %679 = vrot.lane.b32.xlu0 %v676, 64
  %v680 = vpop.permute.xlu0 %679
  %v682 = vmul.f32 %v675, %v680
  %684 = vrot.lane.b32.xlu0 %v682, 32
  %v685 = vpop.permute.xlu0 %684
  %v687 = vadd.f32 %v677, %v685
  %v688 = vtanh.pop %v687
  %690 = vrot.lane.b32.xlu0 %v688, 64
  %v691 = vpop.permute.xlu0 %690
  %v693 = vmul.f32 %v675, %v691
  %v694 = vpack.c.bf16 %v693, %v693
  %v696 = vunpack.c.l.b16 %v642
  %v697 = vpack.c.b16 %v696, %v696
  %698 = vrot.lane.b32.xlu0 %v697, 64
  %v699 = vpop.permute.xlu0 %698
  %v701 = vsel %vm101, %v654, %v699
  %v702 = vsel %vm56, %v701, 0
  %704 = vmatpush.bf16.msra.mxu0 0
  %705 = vmatpush.bf16.msra.mxu0 0
  %706 = vmatpush.bf16.msra.mxu0 0
  %707 = vmatpush.bf16.msra.mxu0 0
  %708 = vmatpush.bf16.msra.mxu0 %v509
  %709 = vmatpush.bf16.msra.mxu0 %v508
  %710 = vmatpush.bf16.msra.mxu0 %v507
  %711 = vmatpush.bf16.msra.mxu0 %v506
  %712 = vmatmul.bf16.gmra.mxu0 %v702
  %v713 = vpop.f32.mrf.mxu0
  %v714 = vadd.f32 %v488, %v713
  %v715 = vpop.f32.mrf.mxu0
  %716 = vdwg.mxu0
  %v717 = vmul.f32 %v714, 0.5
  %v718 = vtanh.pop %v717
  %v719 = vmul.f32 %v718, 0.5
  %v720 = vadd.f32 %v719, 0.5
  %v721 = vtanh.pop %v714
  %v722 = vmul.f32 %v720, %v635
  %724 = vrot.lane.b32.xlu0 %v721, 64
  %v725 = vpop.permute.xlu0 %724
  %v727 = vmul.f32 %v720, %v725
  %729 = vrot.lane.b32.xlu0 %v727, 32
  %v730 = vpop.permute.xlu0 %729
  %v732 = vadd.f32 %v722, %v730
  %v733 = vtanh.pop %v732
  %735 = vrot.lane.b32.xlu0 %v733, 64
  %v736 = vpop.permute.xlu0 %735
  %v738 = vmul.f32 %v720, %v736
  %v739 = vpack.c.bf16 %v738, %v738
  %v740 = vunpack.c.l.bf16 %v739
  %742 = vrot.lane.b32.xlu0 %v740, 32
  %v743 = vpop.permute.xlu0 %742
  %s745 = scalar_lea.vmem [#allocation3], 8
  %746 = vst.msk [vmem:[%s745] sm:$0xff] %vm101, %v743
  %v747 = vld [vmem:[%s252] sm:$0xff]
  %v749 = vunpack.c.l.b16 %v694
  %v750 = vpack.c.b16 %v749, %v749
  %751 = vrot.lane.b32.xlu0 %v750, 32
  %v752 = vpop.permute.xlu0 %751
  %v754 = vsel %vm101, %v752, 0
  %756 = vmatpush.bf16.msra.mxu0 0
  %757 = vmatpush.bf16.msra.mxu0 0
  %758 = vmatpush.bf16.msra.mxu0 0
  %759 = vmatpush.bf16.msra.mxu0 0
  %760 = vmatpush.bf16.msra.mxu0 0
  %761 = vmatpush.bf16.msra.mxu0 0
  %762 = vmatpush.bf16.msra.mxu0 %v397
  %763 = vmatpush.bf16.msra.mxu0 %v396
  %764 = vmatmul.bf16.gmra.mxu0 %v754
  %v765 = vpop.f32.mrf.mxu0
  %v766 = vadd.f32 0.0, %v765
  %v767 = vpop.f32.mrf.mxu0
  %768 = vdwg.mxu0
  %v769 = vadd.f32 %v747, %v766
  %v770 = vmul.f32 %v769, 0.5
  %v771 = vtanh.pop %v770
  %v772 = vmul.f32 %v771, 0.5
  %v773 = vadd.f32 %v772, 0.5
  %v774 = vtanh.pop %v769
  %v775 = vmul.f32 %v773, %v687
  %777 = vrot.lane.b32.xlu0 %v774, 64
  %v778 = vpop.permute.xlu0 %777
  %v780 = vmul.f32 %v773, %v778
  %782 = vrot.lane.b32.xlu0 %v780, 32
  %v783 = vpop.permute.xlu0 %782
  %v785 = vadd.f32 %v775, %v783
  %v786 = vtanh.pop %v785
  %788 = vrot.lane.b32.xlu0 %v786, 64
  %v789 = vpop.permute.xlu0 %788
  %v791 = vmul.f32 %v773, %v789
  %v792 = vpack.c.bf16 %v791, %v791
  %v794 = vunpack.c.l.b16 %v739
  %v795 = vpack.c.b16 %v794, %v794
  %796 = vrot.lane.b32.xlu0 %v795, 64
  %v797 = vpop.permute.xlu0 %796
  %v799 = vsel %vm101, %v752, %v797
  %v800 = vsel %vm56, %v799, 0
  %802 = vmatpush.bf16.msra.mxu0 0
  %803 = vmatpush.bf16.msra.mxu0 0
  %804 = vmatpush.bf16.msra.mxu0 0
  %805 = vmatpush.bf16.msra.mxu0 0
  %806 = vmatpush.bf16.msra.mxu0 %v509
  %807 = vmatpush.bf16.msra.mxu0 %v508
  %808 = vmatpush.bf16.msra.mxu0 %v507
  %809 = vmatpush.bf16.msra.mxu0 %v506
  %810 = vmatmul.bf16.gmra.mxu0 %v800
  %v811 = vpop.f32.mrf.mxu0
  %v812 = vadd.f32 %v488, %v811
  %v813 = vpop.f32.mrf.mxu0
  %814 = vdwg.mxu0
  %v815 = vmul.f32 %v812, 0.5
  %v816 = vtanh.pop %v815
  %v817 = vmul.f32 %v816, 0.5
  %v818 = vadd.f32 %v817, 0.5
  %v819 = vtanh.pop %v812
  %v820 = vmul.f32 %v818, %v732
  %822 = vrot.lane.b32.xlu0 %v819, 64
  %v823 = vpop.permute.xlu0 %822
  %v825 = vmul.f32 %v818, %v823
  %827 = vrot.lane.b32.xlu0 %v825, 32
  %v828 = vpop.permute.xlu0 %827
  %v830 = vadd.f32 %v820, %v828
  %v831 = vtanh.pop %v830
  %833 = vrot.lane.b32.xlu0 %v831, 64
  %v834 = vpop.permute.xlu0 %833
  %v836 = vmul.f32 %v818, %v834
  %v837 = vpack.c.bf16 %v836, %v836
  %v838 = vunpack.c.l.bf16 %v837
  %840 = vrot.lane.b32.xlu0 %v838, 32
  %v841 = vpop.permute.xlu0 %840
  %s843 = scalar_lea.vmem [#allocation3], 16
  %844 = vst.msk [vmem:[%s843] sm:$0xff] %vm101, %v841
  %v845 = vld [vmem:[%s276] sm:$0xff]
  %v847 = vunpack.c.l.b16 %v792
  %v848 = vpack.c.b16 %v847, %v847
  %849 = vrot.lane.b32.xlu0 %v848, 32
  %v850 = vpop.permute.xlu0 %849
  %v852 = vsel %vm101, %v850, 0
  %854 = vmatpush.bf16.msra.mxu0 0
  %855 = vmatpush.bf16.msra.mxu0 0
  %856 = vmatpush.bf16.msra.mxu0 0
  %857 = vmatpush.bf16.msra.mxu0 0
  %858 = vmatpush.bf16.msra.mxu0 0
  %859 = vmatpush.bf16.msra.mxu0 0
  %860 = vmatpush.bf16.msra.mxu0 %v397
  %861 = vmatpush.bf16.msra.mxu0 %v396
  %862 = vmatmul.bf16.gmra.mxu0 %v852
  %v863 = vpop.f32.mrf.mxu0
  %v864 = vadd.f32 0.0, %v863
  %v865 = vpop.f32.mrf.mxu0
  %866 = vdwg.mxu0
  %v867 = vadd.f32 %v845, %v864
  %v868 = vmul.f32 %v867, 0.5
  %v869 = vtanh.pop %v868
  %v870 = vmul.f32 %v869, 0.5
  %v871 = vadd.f32 %v870, 0.5
  %v872 = vtanh.pop %v867
  %v873 = vmul.f32 %v871, %v785
  %875 = vrot.lane.b32.xlu0 %v872, 64
  %v876 = vpop.permute.xlu0 %875
  %v878 = vmul.f32 %v871, %v876
  %880 = vrot.lane.b32.xlu0 %v878, 32
  %v881 = vpop.permute.xlu0 %880
  %v883 = vadd.f32 %v873, %v881
  %v884 = vtanh.pop %v883
  %886 = vrot.lane.b32.xlu0 %v884, 64
  %v887 = vpop.permute.xlu0 %886
  %v889 = vmul.f32 %v871, %v887
  %v890 = vpack.c.bf16 %v889, %v889
  %v892 = vunpack.c.l.b16 %v837
  %v893 = vpack.c.b16 %v892, %v892
  %894 = vrot.lane.b32.xlu0 %v893, 64
  %v895 = vpop.permute.xlu0 %894
  %v897 = vsel %vm101, %v850, %v895
  %v898 = vsel %vm56, %v897, 0
  %900 = vmatpush.bf16.msra.mxu0 0
  %901 = vmatpush.bf16.msra.mxu0 0
  %902 = vmatpush.bf16.msra.mxu0 0
  %903 = vmatpush.bf16.msra.mxu0 0
  %904 = vmatpush.bf16.msra.mxu0 %v509
  %905 = vmatpush.bf16.msra.mxu0 %v508
  %906 = vmatpush.bf16.msra.mxu0 %v507
  %907 = vmatpush.bf16.msra.mxu0 %v506
  %908 = vmatmul.bf16.gmra.mxu0 %v898
  %v909 = vpop.f32.mrf.mxu0
  %v910 = vadd.f32 %v488, %v909
  %v911 = vpop.f32.mrf.mxu0
  %912 = vdwg.mxu0
  %v913 = vmul.f32 %v910, 0.5
  %v914 = vtanh.pop %v913
  %v915 = vmul.f32 %v914, 0.5
  %v916 = vadd.f32 %v915, 0.5
  %v917 = vtanh.pop %v910
  %v918 = vmul.f32 %v916, %v830
  %920 = vrot.lane.b32.xlu0 %v917, 64
  %v921 = vpop.permute.xlu0 %920
  %v923 = vmul.f32 %v916, %v921
  %925 = vrot.lane.b32.xlu0 %v923, 32
  %v926 = vpop.permute.xlu0 %925
  %v928 = vadd.f32 %v918, %v926
  %v929 = vtanh.pop %v928
  %931 = vrot.lane.b32.xlu0 %v929, 64
  %v932 = vpop.permute.xlu0 %931
  %v934 = vmul.f32 %v916, %v932
  %v935 = vpack.c.bf16 %v934, %v934
  %v936 = vunpack.c.l.bf16 %v935
  %938 = vrot.lane.b32.xlu0 %v936, 32
  %v939 = vpop.permute.xlu0 %938
  %s941 = scalar_lea.vmem [#allocation3], 24
  %942 = vst.msk [vmem:[%s941] sm:$0xff] %vm101, %v939
  %v943 = vld [vmem:[%s300] sm:$0xff]
  %v945 = vunpack.c.l.b16 %v890
  %v946 = vpack.c.b16 %v945, %v945
  %947 = vrot.lane.b32.xlu0 %v946, 32
  %v948 = vpop.permute.xlu0 %947
  %v950 = vsel %vm101, %v948, 0
  %952 = vmatpush.bf16.msra.mxu0 0
  %953 = vmatpush.bf16.msra.mxu0 0
  %954 = vmatpush.bf16.msra.mxu0 0
  %955 = vmatpush.bf16.msra.mxu0 0
  %956 = vmatpush.bf16.msra.mxu0 0
  %957 = vmatpush.bf16.msra.mxu0 0
  %958 = vmatpush.bf16.msra.mxu0 %v397
  %959 = vmatpush.bf16.msra.mxu0 %v396
  %960 = vmatmul.bf16.gmra.mxu0 %v950
  %v961 = vpop.f32.mrf.mxu0
  %v962 = vadd.f32 0.0, %v961
  %v963 = vpop.f32.mrf.mxu0
  %964 = vdwg.mxu0
  %v965 = vadd.f32 %v943, %v962
  %v966 = vmul.f32 %v965, 0.5
  %v967 = vtanh.pop %v966
  %v968 = vmul.f32 %v967, 0.5
  %v969 = vadd.f32 %v968, 0.5
  %v970 = vtanh.pop %v965
  %v971 = vmul.f32 %v969, %v883
  %973 = vrot.lane.b32.xlu0 %v970, 64
  %v974 = vpop.permute.xlu0 %973
  %v976 = vmul.f32 %v969, %v974
  %978 = vrot.lane.b32.xlu0 %v976, 32
  %v979 = vpop.permute.xlu0 %978
  %v981 = vadd.f32 %v971, %v979
  %v982 = vtanh.pop %v981
  %984 = vrot.lane.b32.xlu0 %v982, 64
  %v985 = vpop.permute.xlu0 %984
  %v987 = vmul.f32 %v969, %v985
  %v988 = vpack.c.bf16 %v987, %v987
  %v990 = vunpack.c.l.b16 %v935
  %v991 = vpack.c.b16 %v990, %v990
  %992 = vrot.lane.b32.xlu0 %v991, 64
  %v993 = vpop.permute.xlu0 %992
  %v995 = vsel %vm101, %v948, %v993
  %v996 = vsel %vm56, %v995, 0
  %998 = vmatpush.bf16.msra.mxu0 0
  %999 = vmatpush.bf16.msra.mxu0 0
  %1000 = vmatpush.bf16.msra.mxu0 0
  %1001 = vmatpush.bf16.msra.mxu0 0
  %1002 = vmatpush.bf16.msra.mxu0 %v509
  %1003 = vmatpush.bf16.msra.mxu0 %v508
  %1004 = vmatpush.bf16.msra.mxu0 %v507
  %1005 = vmatpush.bf16.msra.mxu0 %v506
  %1006 = vmatmul.bf16.gmra.mxu0 %v996
  %v1007 = vpop.f32.mrf.mxu0
  %v1008 = vadd.f32 %v488, %v1007
  %v1009 = vpop.f32.mrf.mxu0
  %1010 = vdwg.mxu0
  %v1011 = vmul.f32 %v1008, 0.5
  %v1012 = vtanh.pop %v1011
  %v1013 = vmul.f32 %v1012, 0.5
  %v1014 = vadd.f32 %v1013, 0.5
  %v1015 = vtanh.pop %v1008
  %v1016 = vmul.f32 %v1014, %v928
  %1018 = vrot.lane.b32.xlu0 %v1015, 64
  %v1019 = vpop.permute.xlu0 %1018
  %v1021 = vmul.f32 %v1014, %v1019
  %1023 = vrot.lane.b32.xlu0 %v1021, 32
  %v1024 = vpop.permute.xlu0 %1023
  %v1026 = vadd.f32 %v1016, %v1024
  %v1027 = vtanh.pop %v1026
  %1029 = vrot.lane.b32.xlu0 %v1027, 64
  %v1030 = vpop.permute.xlu0 %1029
  %v1032 = vmul.f32 %v1014, %v1030
  %v1033 = vpack.c.bf16 %v1032, %v1032
  %v1034 = vunpack.c.l.bf16 %v1033
  %1036 = vrot.lane.b32.xlu0 %v1034, 32
  %v1037 = vpop.permute.xlu0 %1036
  %s1039 = scalar_lea.vmem [#allocation3], 32
  %1040 = vst.msk [vmem:[%s1039] sm:$0xff] %vm101, %v1037
  %v1041 = vld [vmem:[%s324] sm:$0xff]
  %v1043 = vunpack.c.l.b16 %v988
  %v1044 = vpack.c.b16 %v1043, %v1043
  %1045 = vrot.lane.b32.xlu0 %v1044, 32
  %v1046 = vpop.permute.xlu0 %1045
  %v1048 = vsel %vm101, %v1046, 0
  %1050 = vmatpush.bf16.msra.mxu0 0
  %1051 = vmatpush.bf16.msra.mxu0 0
  %1052 = vmatpush.bf16.msra.mxu0 0
  %1053 = vmatpush.bf16.msra.mxu0 0
  %1054 = vmatpush.bf16.msra.mxu0 0
  %1055 = vmatpush.bf16.msra.mxu0 0
  %1056 = vmatpush.bf16.msra.mxu0 %v397
  %1057 = vmatpush.bf16.msra.mxu0 %v396
  %1058 = vmatmul.bf16.gmra.mxu0 %v1048
  %v1059 = vpop.f32.mrf.mxu0
  %v1060 = vadd.f32 0.0, %v1059
  %v1061 = vpop.f32.mrf.mxu0
  %1062 = vdwg.mxu0
  %v1063 = vadd.f32 %v1041, %v1060
  %v1064 = vmul.f32 %v1063, 0.5
  %v1065 = vtanh.pop %v1064
  %v1066 = vmul.f32 %v1065, 0.5
  %v1067 = vadd.f32 %v1066, 0.5
  %v1068 = vtanh.pop %v1063
  %v1069 = vmul.f32 %v1067, %v981
  %1071 = vrot.lane.b32.xlu0 %v1068, 64
  %v1072 = vpop.permute.xlu0 %1071
  %v1074 = vmul.f32 %v1067, %v1072
  %1076 = vrot.lane.b32.xlu0 %v1074, 32
  %v1077 = vpop.permute.xlu0 %1076
  %v1079 = vadd.f32 %v1069, %v1077
  %v1080 = vtanh.pop %v1079
  %1082 = vrot.lane.b32.xlu0 %v1080, 64
  %v1083 = vpop.permute.xlu0 %1082
  %v1085 = vmul.f32 %v1067, %v1083
  %v1086 = vpack.c.bf16 %v1085, %v1085
  %v1088 = vunpack.c.l.b16 %v1033
  %v1089 = vpack.c.b16 %v1088, %v1088
  %1090 = vrot.lane.b32.xlu0 %v1089, 64
  %v1091 = vpop.permute.xlu0 %1090
  %v1093 = vsel %vm101, %v1046, %v1091
  %v1094 = vsel %vm56, %v1093, 0
  %1096 = vmatpush.bf16.msra.mxu0 0
  %1097 = vmatpush.bf16.msra.mxu0 0
  %1098 = vmatpush.bf16.msra.mxu0 0
  %1099 = vmatpush.bf16.msra.mxu0 0
  %1100 = vmatpush.bf16.msra.mxu0 %v509
  %1101 = vmatpush.bf16.msra.mxu0 %v508
  %1102 = vmatpush.bf16.msra.mxu0 %v507
  %1103 = vmatpush.bf16.msra.mxu0 %v506
  %1104 = vmatmul.bf16.gmra.mxu0 %v1094
  %v1105 = vpop.f32.mrf.mxu0
  %v1106 = vadd.f32 %v488, %v1105
  %v1107 = vpop.f32.mrf.mxu0
  %1108 = vdwg.mxu0
  %v1109 = vmul.f32 %v1106, 0.5
  %v1110 = vtanh.pop %v1109
  %v1111 = vmul.f32 %v1110, 0.5
  %v1112 = vadd.f32 %v1111, 0.5
  %v1113 = vtanh.pop %v1106
  %v1114 = vmul.f32 %v1112, %v1026
  %1116 = vrot.lane.b32.xlu0 %v1113, 64
  %v1117 = vpop.permute.xlu0 %1116
  %v1119 = vmul.f32 %v1112, %v1117
  %1121 = vrot.lane.b32.xlu0 %v1119, 32
  %v1122 = vpop.permute.xlu0 %1121
  %v1124 = vadd.f32 %v1114, %v1122
  %v1125 = vtanh.pop %v1124
  %1127 = vrot.lane.b32.xlu0 %v1125, 64
  %v1128 = vpop.permute.xlu0 %1127
  %v1130 = vmul.f32 %v1112, %v1128
  %v1131 = vpack.c.bf16 %v1130, %v1130
  %v1132 = vunpack.c.l.bf16 %v1131
  %1134 = vrot.lane.b32.xlu0 %v1132, 32
  %v1135 = vpop.permute.xlu0 %1134
  %s1137 = scalar_lea.vmem [#allocation3], 40
  %1138 = vst.msk [vmem:[%s1137] sm:$0xff] %vm101, %v1135
  %v1139 = vld [vmem:[%s348] sm:$0xff]
  %v1141 = vunpack.c.l.b16 %v1086
  %v1142 = vpack.c.b16 %v1141, %v1141
  %1143 = vrot.lane.b32.xlu0 %v1142, 32
  %v1144 = vpop.permute.xlu0 %1143
  %v1146 = vsel %vm101, %v1144, 0
  %1148 = vmatpush.bf16.msra.mxu0 0
  %1149 = vmatpush.bf16.msra.mxu0 0
  %1150 = vmatpush.bf16.msra.mxu0 0
  %1151 = vmatpush.bf16.msra.mxu0 0
  %1152 = vmatpush.bf16.msra.mxu0 0
  %1153 = vmatpush.bf16.msra.mxu0 0
  %1154 = vmatpush.bf16.msra.mxu0 %v397
  %1155 = vmatpush.bf16.msra.mxu0 %v396
  %1156 = vmatmul.bf16.gmra.mxu0 %v1146
  %v1157 = vpop.f32.mrf.mxu0
  %v1158 = vadd.f32 0.0, %v1157
  %v1159 = vpop.f32.mrf.mxu0
  %1160 = vdwg.mxu0
  %v1161 = vadd.f32 %v1139, %v1158
  %v1162 = vmul.f32 %v1161, 0.5
  %v1163 = vtanh.pop %v1162
  %v1164 = vmul.f32 %v1163, 0.5
  %v1165 = vadd.f32 %v1164, 0.5
  %v1166 = vtanh.pop %v1161
  %v1167 = vmul.f32 %v1165, %v1079
  %1169 = vrot.lane.b32.xlu0 %v1166, 64
  %v1170 = vpop.permute.xlu0 %1169
  %v1172 = vmul.f32 %v1165, %v1170
  %1174 = vrot.lane.b32.xlu0 %v1172, 32
  %v1175 = vpop.permute.xlu0 %1174
  %v1177 = vadd.f32 %v1167, %v1175
  %v1178 = vtanh.pop %v1177
  %1180 = vrot.lane.b32.xlu0 %v1178, 64
  %v1181 = vpop.permute.xlu0 %1180
  %v1183 = vmul.f32 %v1165, %v1181
  %v1184 = vpack.c.bf16 %v1183, %v1183
  %v1186 = vunpack.c.l.b16 %v1131
  %v1187 = vpack.c.b16 %v1186, %v1186
  %1188 = vrot.lane.b32.xlu0 %v1187, 64
  %v1189 = vpop.permute.xlu0 %1188
  %v1191 = vsel %vm101, %v1144, %v1189
  %v1192 = vsel %vm56, %v1191, 0
  %1194 = vmatpush.bf16.msra.mxu0 0
  %1195 = vmatpush.bf16.msra.mxu0 0
  %1196 = vmatpush.bf16.msra.mxu0 0
  %1197 = vmatpush.bf16.msra.mxu0 0
  %1198 = vmatpush.bf16.msra.mxu0 %v509
  %1199 = vmatpush.bf16.msra.mxu0 %v508
  %1200 = vmatpush.bf16.msra.mxu0 %v507
  %1201 = vmatpush.bf16.msra.mxu0 %v506
  %1202 = vmatmul.bf16.gmra.mxu0 %v1192
  %v1203 = vpop.f32.mrf.mxu0
  %v1204 = vadd.f32 %v488, %v1203
  %v1205 = vpop.f32.mrf.mxu0
  %1206 = vdwg.mxu0
  %v1207 = vmul.f32 %v1204, 0.5
  %v1208 = vtanh.pop %v1207
  %v1209 = vmul.f32 %v1208, 0.5
  %v1210 = vadd.f32 %v1209, 0.5
  %v1211 = vtanh.pop %v1204
  %v1212 = vmul.f32 %v1210, %v1124
  %1214 = vrot.lane.b32.xlu0 %v1211, 64
  %v1215 = vpop.permute.xlu0 %1214
  %v1217 = vmul.f32 %v1210, %v1215
  %1219 = vrot.lane.b32.xlu0 %v1217, 32
  %v1220 = vpop.permute.xlu0 %1219
  %v1222 = vadd.f32 %v1212, %v1220
  %v1223 = vtanh.pop %v1222
  %1225 = vrot.lane.b32.xlu0 %v1223, 64
  %v1226 = vpop.permute.xlu0 %1225
  %v1228 = vmul.f32 %v1210, %v1226
  %v1229 = vpack.c.bf16 %v1228, %v1228
  %v1230 = vunpack.c.l.bf16 %v1229
  %1232 = vrot.lane.b32.xlu0 %v1230, 32
  %v1233 = vpop.permute.xlu0 %1232
  %s1235 = scalar_lea.vmem [#allocation3], 48
  %1236 = vst.msk [vmem:[%s1235] sm:$0xff] %vm101, %v1233
  %v1237 = vld [vmem:[%s372] sm:$0xff]
  %v1239 = vunpack.c.l.b16 %v1184
  %v1240 = vpack.c.b16 %v1239, %v1239
  %1241 = vrot.lane.b32.xlu0 %v1240, 32
  %v1242 = vpop.permute.xlu0 %1241
  %v1244 = vsel %vm101, %v1242, 0
  %1246 = vmatpush.bf16.msra.mxu0 0
  %1247 = vmatpush.bf16.msra.mxu0 0
  %1248 = vmatpush.bf16.msra.mxu0 0
  %1249 = vmatpush.bf16.msra.mxu0 0
  %1250 = vmatpush.bf16.msra.mxu0 0
  %1251 = vmatpush.bf16.msra.mxu0 0
  %1252 = vmatpush.bf16.msra.mxu0 %v397
  %1253 = vmatpush.bf16.msra.mxu0 %v396
  %1254 = vmatmul.bf16.gmra.mxu0 %v1244
  %v1255 = vpop.f32.mrf.mxu0
  %v1256 = vadd.f32 0.0, %v1255
  %v1257 = vpop.f32.mrf.mxu0
  %1258 = vdwg.mxu0
  %v1259 = vadd.f32 %v1237, %v1256
  %v1260 = vmul.f32 %v1259, 0.5
  %v1261 = vtanh.pop %v1260
  %v1262 = vmul.f32 %v1261, 0.5
  %v1263 = vadd.f32 %v1262, 0.5
  %v1264 = vtanh.pop %v1259
  %v1265 = vmul.f32 %v1263, %v1177
  %1267 = vrot.lane.b32.xlu0 %v1264, 64
  %v1268 = vpop.permute.xlu0 %1267
  %v1270 = vmul.f32 %v1263, %v1268
  %1272 = vrot.lane.b32.xlu0 %v1270, 32
  %v1273 = vpop.permute.xlu0 %1272
  %v1275 = vadd.f32 %v1265, %v1273
  %v1276 = vtanh.pop %v1275
  %1278 = vrot.lane.b32.xlu0 %v1276, 64
  %v1279 = vpop.permute.xlu0 %1278
  %v1281 = vmul.f32 %v1263, %v1279
  %v1282 = vpack.c.bf16 %v1281, %v1281
  %v1284 = vunpack.c.l.b16 %v1229
  %v1285 = vpack.c.b16 %v1284, %v1284
  %1286 = vrot.lane.b32.xlu0 %v1285, 64
  %v1287 = vpop.permute.xlu0 %1286
  %v1289 = vsel %vm101, %v1242, %v1287
  %v1290 = vsel %vm56, %v1289, 0
  %1292 = vmatpush.bf16.msra.mxu0 0
  %1293 = vmatpush.bf16.msra.mxu0 0
  %1294 = vmatpush.bf16.msra.mxu0 0
  %1295 = vmatpush.bf16.msra.mxu0 0
  %1296 = vmatpush.bf16.msra.mxu0 %v509
  %1297 = vmatpush.bf16.msra.mxu0 %v508
  %1298 = vmatpush.bf16.msra.mxu0 %v507
  %1299 = vmatpush.bf16.msra.mxu0 %v506
  %1300 = vmatmul.bf16.gmra.mxu0 %v1290
  %v1301 = vpop.f32.mrf.mxu0
  %v1302 = vadd.f32 %v488, %v1301
  %v1303 = vpop.f32.mrf.mxu0
  %1304 = vdwg.mxu0
  %v1305 = vmul.f32 %v1302, 0.5
  %v1306 = vtanh.pop %v1305
  %v1307 = vmul.f32 %v1306, 0.5
  %v1308 = vadd.f32 %v1307, 0.5
  %v1309 = vtanh.pop %v1302
  %v1310 = vmul.f32 %v1308, %v1222
  %1312 = vrot.lane.b32.xlu0 %v1309, 64
  %v1313 = vpop.permute.xlu0 %1312
  %v1315 = vmul.f32 %v1308, %v1313
  %1317 = vrot.lane.b32.xlu0 %v1315, 32
  %v1318 = vpop.permute.xlu0 %1317
  %v1320 = vadd.f32 %v1310, %v1318
  %v1321 = vtanh.pop %v1320
  %1323 = vrot.lane.b32.xlu0 %v1321, 64
  %v1324 = vpop.permute.xlu0 %1323
  %v1326 = vmul.f32 %v1308, %v1324
  %v1327 = vpack.c.bf16 %v1326, %v1326
  %v1328 = vunpack.c.l.bf16 %v1327
  %1330 = vrot.lane.b32.xlu0 %v1328, 32
  %v1331 = vpop.permute.xlu0 %1330
  %s1333 = scalar_lea.vmem [#allocation3], 56
  %1334 = vst.msk [vmem:[%s1333] sm:$0xff] %vm101, %v1331
  %v1336 = vunpack.c.l.b16 %v1282
  %v1337 = vpack.c.b16 %v1336, %v1336
  %1338 = vrot.lane.b32.xlu0 %v1337, 32
  %v1339 = vpop.permute.xlu0 %1338
  %v1341 = vunpack.c.l.b16 %v1327
  %v1342 = vpack.c.b16 %v1341, %v1341
  %1343 = vrot.lane.b32.xlu0 %v1342, 64
  %v1344 = vpop.permute.xlu0 %1343
  %v1347 = vsel %vm101, %v1339, %v1344
  %v1348 = vsel %vm56, %v1347, 0
  %1350 = vmatpush.bf16.msra.mxu0 0
  %1351 = vmatpush.bf16.msra.mxu0 0
  %1352 = vmatpush.bf16.msra.mxu0 0
  %1353 = vmatpush.bf16.msra.mxu0 0
  %1354 = vmatpush.bf16.msra.mxu0 %v509
  %1355 = vmatpush.bf16.msra.mxu0 %v508
  %1356 = vmatpush.bf16.msra.mxu0 %v507
  %1357 = vmatpush.bf16.msra.mxu0 %v506
  %1358 = vmatmul.bf16.gmra.mxu0 %v1348
  %v1359 = vpop.f32.mrf.mxu0
  %v1360 = vadd.f32 %v488, %v1359
  %v1361 = vpop.f32.mrf.mxu0
  %1362 = vdwg.mxu0
  %v1363 = vmul.f32 %v1360, 0.5
  %v1364 = vtanh.pop %v1363
  %v1365 = vmul.f32 %v1364, 0.5
  %v1366 = vadd.f32 %v1365, 0.5
  %v1367 = vtanh.pop %v1360
  %v1368 = vmul.f32 %v1366, %v1320
  %1370 = vrot.lane.b32.xlu0 %v1367, 64
  %v1371 = vpop.permute.xlu0 %1370
  %v1373 = vmul.f32 %v1366, %v1371
  %1375 = vrot.lane.b32.xlu0 %v1373, 32
  %v1376 = vpop.permute.xlu0 %1375
  %v1378 = vadd.f32 %v1368, %v1376
  %v1379 = vtanh.pop %v1378
  %1381 = vrot.lane.b32.xlu0 %v1379, 64
  %v1382 = vpop.permute.xlu0 %1381
  %v1384 = vmul.f32 %v1366, %v1382
  %v1385 = vpack.c.bf16 %v1384, %v1384
  %v1386 = vunpack.c.l.bf16 %v1385
  %1388 = vrot.lane.b32.xlu0 %v1386, 32
  %v1389 = vpop.permute.xlu0 %1388
  %s1391 = scalar_lea.vmem [#allocation3], 64
  %1392 = vst.msk [vmem:[%s1391] sm:$0xff] %vm101, %v1389
  %v1393 = vld [vmem:[#allocation3] sm:$0xff]
  %v1394 = vld [vmem:[#allocation3 + $0x8] sm:$0xff]
  %v1395 = vld [vmem:[#allocation3 + $0x10] sm:$0xff]
  %v1396 = vld [vmem:[#allocation3 + $0x18] sm:$0xff]
  %v1397 = vld [vmem:[#allocation3 + $0x20] sm:$0xff]
  %v1398 = vld [vmem:[#allocation3 + $0x28] sm:$0xff]
  %v1399 = vld [vmem:[#allocation3 + $0x30] sm:$0xff]
  %v1400 = vld [vmem:[#allocation3 + $0x38] sm:$0xff]
  %v1401 = vld [vmem:[#allocation3 + $0x40] sm:$0xff]
  %v1402 = vpack.c.bf16 %v1394, %v1393
  %v1403 = vpack.c.bf16 %v1396, %v1395
  %v1404 = vpack.c.bf16 %v1398, %v1397
  %v1405 = vpack.c.bf16 %v1400, %v1399
  %v1406 = vpack.c.bf16 %v1401, %v1401
  %v1407 = vld [vmem:[%s10] sm:$0xf]
  %v1408 = vld [vmem:[%s10 + $0x4] sm:$0xf]
  %v1409 = vld [vmem:[%s10 + $0x8] sm:$0xf]
  %v1410 = vld [vmem:[%s10 + $0xc] sm:$0xf]
  %v1411 = vld [vmem:[%s11] sm:$0x1]
  %v1413 = vperm.slane %v1411, 0
  %v1419 = vunpack.c.l.b16 %v1407
  %v1420 = vunpack.c.l.b16 %v1408
  %v1421 = vunpack.c.l.b16 %v1409
  %v1422 = vunpack.c.l.b16 %v1410
  %v1423 = vpack.c.b16 %v1420, %v1419
  %v1424 = vpack.c.b16 %v1422, %v1421
  %v1428 = vsel %vm101, %v1402, 0
  %v1431 = vsel %vm101, %v1403, 0
  %v1434 = vsel %vm101, %v1404, 0
  %v1437 = vsel %vm101, %v1405, 0
  %v1440 = vsel %vm101, %v1406, 0
  %1442 = vmatpush.bf16.msra.mxu0 0
  %1443 = vmatpush.bf16.msra.mxu0 0
  %1444 = vmatpush.bf16.msra.mxu0 0
  %1445 = vmatpush.bf16.msra.mxu0 0
  %1446 = vmatpush.bf16.msra.mxu0 0
  %1447 = vmatpush.bf16.msra.mxu0 0
  %1448 = vmatpush.bf16.msra.mxu0 %v1424
  %1449 = vmatpush.bf16.msra.mxu0 %v1423
  %1450 = vmatmul.bf16.gmra.mxu0 %v1428
  %v1451 = vpop.f32.mrf.mxu0
  %v1452 = vadd.f32 %v1413, %v1451
  %v1453 = vpop.f32.mrf.mxu0
  %v1454 = vadd.f32 %v1413, %v1453
  %1455 = vmatmul.bf16.gmra.mxu0 %v1431
  %v1456 = vpop.f32.mrf.mxu0
  %v1457 = vadd.f32 %v1413, %v1456
  %v1458 = vpop.f32.mrf.mxu0
  %v1459 = vadd.f32 %v1413, %v1458
  %1460 = vmatmul.bf16.gmra.mxu0 %v1434
  %v1461 = vpop.f32.mrf.mxu0
  %v1462 = vadd.f32 %v1413, %v1461
  %v1463 = vpop.f32.mrf.mxu0
  %v1464 = vadd.f32 %v1413, %v1463
  %1465 = vmatmul.bf16.gmra.mxu0 %v1437
  %v1466 = vpop.f32.mrf.mxu0
  %v1467 = vadd.f32 %v1413, %v1466
  %v1468 = vpop.f32.mrf.mxu0
  %v1469 = vadd.f32 %v1413, %v1468
  %1470 = vmatmul.bf16.gmra.mxu0 %v1440
  %v1471 = vpop.f32.mrf.mxu0
  %v1472 = vadd.f32 %v1413, %v1471
  %v1473 = vpop.f32.mrf.mxu0
  %1474 = vdwg.mxu0
  %v1476 = vrot.slane %v1452, 1
  %v1477 = vrot.slane %v1452, 2
  %v1478 = vrot.slane %v1452, 3
  %v1479 = vrot.slane %v1452, 4
  %v1480 = vrot.slane %v1452, 5
  %v1481 = vrot.slane %v1452, 6
  %v1482 = vrot.slane %v1452, 7
  %1490 = vst [vmem:[%s12] sm:$0x1] %v1452
  %1491 = vst [vmem:[%s12 + $0x10] sm:$0x1] %v1476
  %1492 = vst [vmem:[%s12 + $0x20] sm:$0x1] %v1477
  %1493 = vst [vmem:[%s12 + $0x30] sm:$0x1] %v1478
  %1494 = vst [vmem:[%s12 + $0x40] sm:$0x1] %v1479
  %1495 = vst [vmem:[%s12 + $0x50] sm:$0x1] %v1480
  %1496 = vst [vmem:[%s12 + $0x60] sm:$0x1] %v1481
  %1497 = vst [vmem:[%s12 + $0x70] sm:$0x1] %v1482
  %v1499 = vrot.slane %v1454, 1
  %v1500 = vrot.slane %v1454, 2
  %v1501 = vrot.slane %v1454, 3
  %v1502 = vrot.slane %v1454, 4
  %v1503 = vrot.slane %v1454, 5
  %v1504 = vrot.slane %v1454, 6
  %v1505 = vrot.slane %v1454, 7
  %1513 = vst [vmem:[%s12 + $0x1] sm:$0x1] %v1454
  %1514 = vst [vmem:[%s12 + $0x11] sm:$0x1] %v1499
  %1515 = vst [vmem:[%s12 + $0x21] sm:$0x1] %v1500
  %1516 = vst [vmem:[%s12 + $0x31] sm:$0x1] %v1501
  %1517 = vst [vmem:[%s12 + $0x41] sm:$0x1] %v1502
  %1518 = vst [vmem:[%s12 + $0x51] sm:$0x1] %v1503
  %1519 = vst [vmem:[%s12 + $0x61] sm:$0x1] %v1504
  %1520 = vst [vmem:[%s12 + $0x71] sm:$0x1] %v1505
  %v1522 = vrot.slane %v1457, 1
  %v1523 = vrot.slane %v1457, 2
  %v1524 = vrot.slane %v1457, 3
  %v1525 = vrot.slane %v1457, 4
  %v1526 = vrot.slane %v1457, 5
  %v1527 = vrot.slane %v1457, 6
  %v1528 = vrot.slane %v1457, 7
  %1536 = vst [vmem:[%s12 + $0x2] sm:$0x1] %v1457
  %1537 = vst [vmem:[%s12 + $0x12] sm:$0x1] %v1522
  %1538 = vst [vmem:[%s12 + $0x22] sm:$0x1] %v1523
  %1539 = vst [vmem:[%s12 + $0x32] sm:$0x1] %v1524
  %1540 = vst [vmem:[%s12 + $0x42] sm:$0x1] %v1525
  %1541 = vst [vmem:[%s12 + $0x52] sm:$0x1] %v1526
  %1542 = vst [vmem:[%s12 + $0x62] sm:$0x1] %v1527
  %1543 = vst [vmem:[%s12 + $0x72] sm:$0x1] %v1528
  %v1545 = vrot.slane %v1459, 1
  %v1546 = vrot.slane %v1459, 2
  %v1547 = vrot.slane %v1459, 3
  %v1548 = vrot.slane %v1459, 4
  %v1549 = vrot.slane %v1459, 5
  %v1550 = vrot.slane %v1459, 6
  %v1551 = vrot.slane %v1459, 7
  %1559 = vst [vmem:[%s12 + $0x3] sm:$0x1] %v1459
  %1560 = vst [vmem:[%s12 + $0x13] sm:$0x1] %v1545
  %1561 = vst [vmem:[%s12 + $0x23] sm:$0x1] %v1546
  %1562 = vst [vmem:[%s12 + $0x33] sm:$0x1] %v1547
  %1563 = vst [vmem:[%s12 + $0x43] sm:$0x1] %v1548
  %1564 = vst [vmem:[%s12 + $0x53] sm:$0x1] %v1549
  %1565 = vst [vmem:[%s12 + $0x63] sm:$0x1] %v1550
  %1566 = vst [vmem:[%s12 + $0x73] sm:$0x1] %v1551
  %v1568 = vrot.slane %v1462, 1
  %v1569 = vrot.slane %v1462, 2
  %v1570 = vrot.slane %v1462, 3
  %v1571 = vrot.slane %v1462, 4
  %v1572 = vrot.slane %v1462, 5
  %v1573 = vrot.slane %v1462, 6
  %v1574 = vrot.slane %v1462, 7
  %1582 = vst [vmem:[%s12 + $0x4] sm:$0x1] %v1462
  %1583 = vst [vmem:[%s12 + $0x14] sm:$0x1] %v1568
  %1584 = vst [vmem:[%s12 + $0x24] sm:$0x1] %v1569
  %1585 = vst [vmem:[%s12 + $0x34] sm:$0x1] %v1570
  %1586 = vst [vmem:[%s12 + $0x44] sm:$0x1] %v1571
  %1587 = vst [vmem:[%s12 + $0x54] sm:$0x1] %v1572
  %1588 = vst [vmem:[%s12 + $0x64] sm:$0x1] %v1573
  %1589 = vst [vmem:[%s12 + $0x74] sm:$0x1] %v1574
  %v1591 = vrot.slane %v1464, 1
  %v1592 = vrot.slane %v1464, 2
  %v1593 = vrot.slane %v1464, 3
  %v1594 = vrot.slane %v1464, 4
  %v1595 = vrot.slane %v1464, 5
  %v1596 = vrot.slane %v1464, 6
  %v1597 = vrot.slane %v1464, 7
  %1605 = vst [vmem:[%s12 + $0x5] sm:$0x1] %v1464
  %1606 = vst [vmem:[%s12 + $0x15] sm:$0x1] %v1591
  %1607 = vst [vmem:[%s12 + $0x25] sm:$0x1] %v1592
  %1608 = vst [vmem:[%s12 + $0x35] sm:$0x1] %v1593
  %1609 = vst [vmem:[%s12 + $0x45] sm:$0x1] %v1594
  %1610 = vst [vmem:[%s12 + $0x55] sm:$0x1] %v1595
  %1611 = vst [vmem:[%s12 + $0x65] sm:$0x1] %v1596
  %1612 = vst [vmem:[%s12 + $0x75] sm:$0x1] %v1597
  %v1614 = vrot.slane %v1467, 1
  %v1615 = vrot.slane %v1467, 2
  %v1616 = vrot.slane %v1467, 3
  %v1617 = vrot.slane %v1467, 4
  %v1618 = vrot.slane %v1467, 5
  %v1619 = vrot.slane %v1467, 6
  %v1620 = vrot.slane %v1467, 7
  %1628 = vst [vmem:[%s12 + $0x6] sm:$0x1] %v1467
  %1629 = vst [vmem:[%s12 + $0x16] sm:$0x1] %v1614
  %1630 = vst [vmem:[%s12 + $0x26] sm:$0x1] %v1615
  %1631 = vst [vmem:[%s12 + $0x36] sm:$0x1] %v1616
  %1632 = vst [vmem:[%s12 + $0x46] sm:$0x1] %v1617
  %1633 = vst [vmem:[%s12 + $0x56] sm:$0x1] %v1618
  %1634 = vst [vmem:[%s12 + $0x66] sm:$0x1] %v1619
  %1635 = vst [vmem:[%s12 + $0x76] sm:$0x1] %v1620
  %v1637 = vrot.slane %v1469, 1
  %v1638 = vrot.slane %v1469, 2
  %v1639 = vrot.slane %v1469, 3
  %v1640 = vrot.slane %v1469, 4
  %v1641 = vrot.slane %v1469, 5
  %v1642 = vrot.slane %v1469, 6
  %v1643 = vrot.slane %v1469, 7
  %1651 = vst [vmem:[%s12 + $0x7] sm:$0x1] %v1469
  %1652 = vst [vmem:[%s12 + $0x17] sm:$0x1] %v1637
  %1653 = vst [vmem:[%s12 + $0x27] sm:$0x1] %v1638
  %1654 = vst [vmem:[%s12 + $0x37] sm:$0x1] %v1639
  %1655 = vst [vmem:[%s12 + $0x47] sm:$0x1] %v1640
  %1656 = vst [vmem:[%s12 + $0x57] sm:$0x1] %v1641
  %1657 = vst [vmem:[%s12 + $0x67] sm:$0x1] %v1642
  %1658 = vst [vmem:[%s12 + $0x77] sm:$0x1] %v1643
  %v1660 = vrot.slane %v1472, 1
  %v1661 = vrot.slane %v1472, 2
  %v1662 = vrot.slane %v1472, 3
  %v1663 = vrot.slane %v1472, 4
  %v1664 = vrot.slane %v1472, 5
  %v1665 = vrot.slane %v1472, 6
  %v1666 = vrot.slane %v1472, 7
  %1674 = vst [vmem:[%s12 + $0x8] sm:$0x1] %v1472
  %1675 = vst [vmem:[%s12 + $0x18] sm:$0x1] %v1660
  %1676 = vst [vmem:[%s12 + $0x28] sm:$0x1] %v1661
  %1677 = vst [vmem:[%s12 + $0x38] sm:$0x1] %v1662
  %1678 = vst [vmem:[%s12 + $0x48] sm:$0x1] %v1663
  %1679 = vst [vmem:[%s12 + $0x58] sm:$0x1] %v1664
  %1680 = vst [vmem:[%s12 + $0x68] sm:$0x1] %v1665
  %1681 = vst [vmem:[%s12 + $0x78] sm:$0x1] %v1666
  // Predicated region
  $region50: #{language_model_forward.1} parent=0 // pred_check
    _
  $region51: #{language_model_forward.1} parent=0 // pred_check_branch
    %1683 = sbr.rel (0) target = $region53
  $region52: #{language_model_forward.1} parent=0 // pred_region
    _
  $region53: #{language_model_forward.1} parent=0 // pred_fallthru
    _
  // Predicated region
  $region54: #{language_model_forward.1} parent=0 // pred_check
    _
  $region55: #{language_model_forward.1} parent=0 // pred_check_branch
    %1685 = sbr.rel (0) target = $region57
  $region56: #{language_model_forward.1} parent=0 // pred_region
    _
  $region57: #{language_model_forward.1} parent=0 // pred_fallthru
    _

</llo_original>
